<compile_context>
chip_gen: v6e
topology: v6e:2x2x1
jax: 0.10.0
libtpu: 0.0.40
codegen_flags: <defaults>
</compile_context>

<pallas_src>
import jax
import jax.numpy as jnp
from jax.experimental import pallas as pl
from jax.experimental.pallas import tpu as pltpu


def _round_up(v, m):
    return ((v + m - 1) // m) * m


# ------------------------- Fused forward kernel ------------------------------
def _make_kernel(cin, cout, f1, ncls_pad, wp, l_ext, offs):
    r_bconv, r_fcw, r_fcb, r_w2, r_b2 = offs

    def kernel(x_ref, w9_ref, slab_ref, mask_ref, out_ref):
        # x_ref:    (1, Cin, Lx)   bf16  padded sample, row-major (Hp, Wp) flat
        # w9_ref:   (9*Cout, Cin)  bf16  conv taps; tap t = rows [t*Cout,(t+1)*Cout)
        # slab_ref: (rows, 128)    f32   {conv_b, fc_w, fc_b, final_w, final_b}
        # mask_ref: (1, L_ext)     f32   1/(H*W) on valid cols, 0 on wrap cols
        # out_ref:  (1, 1, 128)    f32   logits row, zero beyond class n_classes
        xf = x_ref[0]          # (Cin, Lx), loaded once
        w9 = w9_ref[...]       # (9*Cout, Cin)

        # Conv2d(k=3, pad=1) + bias + ReLU on the extended H x (W+2) grid:
        # nine shifted (Cout,Cin)x(Cin,L_ext) MXU matmuls accumulated in f32.
        conv = jnp.zeros((cout, l_ext), jnp.float32)
        for t in range(9):
            dy, dx = divmod(t, 3)
            start = dy * wp + dx
            xs = xf[:, start:start + l_ext]            # (Cin, L_ext) static lane slice
            wt = w9[t * cout:(t + 1) * cout, :]        # (Cout, Cin)
            conv = conv + jnp.dot(wt, xs, preferred_element_type=jnp.float32)
        bconv = slab_ref[r_bconv:r_bconv + cout, 0:1]  # (Cout, 1)
        conv = jnp.maximum(conv + bconv, 0.0)

        # Global average pool: masked lane reduce (mask folds the 1/(H*W) scale
        # and zeroes the wrap columns of the extended grid).
        pooled = jnp.sum(conv * mask_ref[...], axis=-1).reshape(1, cout)   # (1, Cout)

        # Backbone fc + ReLU (f32).
        w1 = slab_ref[r_fcw:r_fcw + cout, 0:f1]        # (Cout, F1)
        b1 = slab_ref[r_fcb:r_fcb + 1, 0:f1]           # (1, F1)
        h = jnp.maximum(
            jnp.dot(pooled, w1, preferred_element_type=jnp.float32) + b1, 0.0)

        # DeepClassifier.final_layer (class axis zero-padded to 128 lanes).
        w2 = slab_ref[r_w2:r_w2 + f1, :]               # (F1, 128)
        b2 = slab_ref[r_b2:r_b2 + 1, :]                # (1, 128)
        out = jnp.dot(h, w2, preferred_element_type=jnp.float32) + b2
        out_ref[...] = out.reshape(1, 1, ncls_pad)

    return kernel


# --------------------------------- Wrapper -----------------------------------
def deep_classifier_forward(x_nchw, params):
    x = x_nchw.astype(jnp.float32)
    n, cin, h, w = x.shape
    kh, kw = params["conv_w"].shape[:2]                 # (3, 3)
    cout = params["conv_w"].shape[3]
    f1 = params["fc_w"].shape[1]
    ncls = params["final_w"].shape[1]
    ncls_pad = 128

    hp, wp = h + kh - 1, w + kw - 1                     # padded image dims (pad=1)
    l_ext = h * wp                                      # extended output grid length
    max_start = (kh - 1) * wp + (kw - 1)
    lx = _round_up(max(hp * wp, max_start + l_ext), 128)

    # Padded input, flattened per channel, lane-padded, cast to bf16 for the MXU.
    xp = jnp.pad(x, ((0, 0), (0, 0), (1, 1), (1, 1)))   # (N, Cin, Hp, Wp)
    x_flat = xp.reshape(n, cin, hp * wp)
    x_flat = jnp.pad(x_flat, ((0, 0), (0, 0), (0, lx - hp * wp)))
    x_flat = x_flat.astype(jnp.bfloat16)                # (N, Cin, Lx)

    # Conv taps: tap t = dy*3+dx occupies rows [t*Cout,(t+1)*Cout), laid (Cout, Cin).
    w9 = params["conv_w"].transpose(0, 1, 3, 2).reshape(kh * kw * cout, cin)
    w9 = w9.astype(jnp.bfloat16)

    # Pack all remaining parameters into one f32 slab (lane-dense width 128).
    r_bconv = 0
    r_fcw = _round_up(r_bconv + cout, 8)
    r_fcb = r_fcw + cout
    r_w2 = _round_up(r_fcb + 1, 8)
    r_b2 = r_w2 + f1
    slab_rows = _round_up(r_b2 + 1, 8)
    slab = jnp.zeros((slab_rows, ncls_pad), jnp.float32)
    slab = slab.at[r_bconv:r_bconv + cout, 0].set(params["conv_b"])
    slab = slab.at[r_fcw:r_fcw + cout, 0:f1].set(params["fc_w"])
    slab = slab.at[r_fcb, 0:f1].set(params["fc_b"])
    slab = slab.at[r_w2:r_w2 + f1, 0:ncls].set(params["final_w"])
    slab = slab.at[r_b2, 0:ncls].set(params["final_b"])

    # Pool mask on the extended grid: 1/(H*W) on the W valid columns per row,
    # 0 on the (kw-1) wrap columns.
    col = jnp.arange(l_ext, dtype=jnp.int32) % wp
    mask = jnp.where(col < w, 1.0 / (h * w), 0.0).astype(jnp.float32).reshape(1, l_ext)

    kernel = _make_kernel(cin, cout, f1, ncls_pad, wp, l_ext,
                          (r_bconv, r_fcw, r_fcb, r_w2, r_b2))

    out = pl.pallas_call(
        kernel,
        out_shape=jax.ShapeDtypeStruct((n, 1, ncls_pad), jnp.float32),
        grid=(n,),
        in_specs=[
            pl.BlockSpec((1, cin, lx), lambda i: (i, 0, 0)),        # per-sample activations
            pl.BlockSpec((kh * kw * cout, cin), lambda i: (0, 0)),  # resident conv taps
            pl.BlockSpec((slab_rows, ncls_pad), lambda i: (0, 0)),  # resident param slab
            pl.BlockSpec((1, l_ext), lambda i: (0, 0)),             # resident pool mask
        ],
        out_specs=pl.BlockSpec((1, 1, ncls_pad), lambda i: (i, 0, 0)),
        compiler_params=pltpu.CompilerParams(
            dimension_semantics=("parallel",),        # feed both v7x TensorCores
            vmem_limit_bytes=32 * 1024 * 1024,
        ),
    )(x_flat, w9, slab, mask)

    return out.reshape(n, ncls_pad)[:, :ncls]          # (N, 10)


# --------------------------------- Params ------------------------------------
def init_params(key, cin=4, cout=8, fc_out=32, n_classes=10):
    ks = jax.random.split(key, 6)

    def uni(k, shape, fan_in):
        bound = 1.0 / jnp.sqrt(jnp.float32(fan_in))
        return jax.random.uniform(k, shape, jnp.float32, -bound, bound)

    conv_fan_in = cin * 3 * 3
    return {
        "conv_w": uni(ks[0], (3, 3, cin, cout), conv_fan_in),   # HWIO
        "conv_b": uni(ks[1], (cout,), conv_fan_in),
        "fc_w": uni(ks[2], (cout, fc_out), cout),               # (in, out)
        "fc_b": uni(ks[3], (fc_out,), cout),
        "final_w": uni(ks[4], (fc_out, n_classes), fc_out),     # (in, out)
        "final_b": uni(ks[5], (n_classes,), fc_out),
    }


# ------------------------------- Reference -----------------------------------
def reference_forward(x_nchw, p, quantize_mxu=False):
    # Pure-JAX reference.  quantize_mxu=True rounds the conv MXU operands to
    # bf16 (as the kernel does) so the kernel structure can be checked tightly.
    q = (lambda a: a.astype(jnp.bfloat16).astype(jnp.float32)) if quantize_mxu \
        else (lambda a: a)
    x = q(x_nchw.astype(jnp.float32))
    conv_w = q(p["conv_w"].astype(jnp.float32))
    n, cin, h, w = x.shape
    cout = conv_w.shape[3]
    xp = jnp.pad(x, ((0, 0), (0, 0), (1, 1), (1, 1)))
    acc = jnp.zeros((n, cout, h, w), jnp.float32)
    for dy in range(3):
        for dx in range(3):
            acc = acc + jnp.einsum("nchw,co->nohw",
                                   xp[:, :, dy:dy + h, dx:dx + w], conv_w[dy, dx])
    y = jnp.maximum(acc + p["conv_b"][None, :, None, None], 0.0)
    pooled = jnp.mean(y, axis=(2, 3))                            # (N, Cout)
    hfc = jnp.maximum(pooled @ p["fc_w"] + p["fc_b"], 0.0)       # (N, F1)
    return hfc @ p["final_w"] + p["final_b"]                     # (N, 10)


if __name__ == "__main__":
    key = jax.random.PRNGKey(0)
    k_x, k_p = jax.random.split(key)

    # Small shapes consistent with the module's conv backbone (NCHW like PyTorch).
    x = jax.random.normal(k_x, (2, 4, 16, 16), jnp.float32)
    params = init_params(k_p)

    logits = jax.block_until_ready(deep_classifier_forward(x, params))
    assert logits.shape == (2, 10)

    # Tight structural check: reference with identically bf16-rounded MXU
    # operands (validates tap offsets, masking, pooling and both dense layers).
    ref_q = reference_forward(x, params, quantize_mxu=True)
    assert jnp.allclose(logits, ref_q, atol=1e-3, rtol=1e-3)

    # Module-semantics check vs. pure f32 (tolerance loosened because the conv
    # MXU inputs are bf16 with f32 accumulation).
    ref = reference_forward(x, params, quantize_mxu=False)
    assert jnp.allclose(logits, ref, atol=3e-2, rtol=3e-2)

    print("KERNEL_OK")
</pallas_src>

<mosaic_0001>
module attributes {stable_mosaic.version = 11 : i64} {
  func.func @kernel(%arg0: i32, %arg1: memref<1x4x384xbf16, #tpu.memory_space<vmem>>, %arg2: memref<72x4xbf16, #tpu.memory_space<vmem>>, %arg3: memref<64x128xf32, #tpu.memory_space<vmem>>, %arg4: memref<1x288xf32, #tpu.memory_space<vmem>>, %arg5: memref<1x1x128xf32, #tpu.memory_space<vmem>>) attributes {dimension_semantics = [#tpu.dimension_semantics<parallel>], iteration_bounds = array<i64: 2>, scalar_prefetch = 0 : i64, scratch_operands = 0 : i64, tpu.core_type = #tpu.core_type<tc>, window_params = [{transform_indices = @transform_0, window_bounds = array<i64: 1, 4, 384>}, {pipeline_mode = #tpu.pipeline_mode<synchronous>, transform_indices = @transform_1, window_bounds = array<i64: 72, 4>}, {pipeline_mode = #tpu.pipeline_mode<synchronous>, transform_indices = @transform_2, window_bounds = array<i64: 64, 128>}, {pipeline_mode = #tpu.pipeline_mode<synchronous>, transform_indices = @transform_3, window_bounds = array<i64: 1, 288>}, {transform_indices = @transform_4, window_bounds = array<i64: 1, 1, 128>}]} {
    %c0 = arith.constant 0 : index
    %c0_0 = arith.constant 0 : index
    %c0_1 = arith.constant 0 : index
    %0 = vector.load %arg1[%c0, %c0_0, %c0_1] : memref<1x4x384xbf16, #tpu.memory_space<vmem>>, vector<1x4x384xbf16>
    %1 = vector.shape_cast %0 : vector<1x4x384xbf16> to vector<4x384xbf16>
    %c0_2 = arith.constant 0 : index
    %c0_3 = arith.constant 0 : index
    %2 = vector.load %arg2[%c0_2, %c0_3] : memref<72x4xbf16, #tpu.memory_space<vmem>>, vector<72x4xbf16>
    %cst = arith.constant 0.000000e+00 : f32
    %3 = vector.broadcast %cst : f32 to vector<8x288xf32>
    %4 = vector.extract_strided_slice %1 {offsets = [0, 0], sizes = [4, 288], strides = [1, 1]} : vector<4x384xbf16> to vector<4x288xbf16>
    %5 = vector.extract_strided_slice %2 {offsets = [0, 0], sizes = [8, 4], strides = [1, 1]} : vector<72x4xbf16> to vector<8x4xbf16>
    %cst_4 = arith.constant dense<0.000000e+00> : vector<8x288xf32>
    %6 = tpu.matmul %5, %4, %cst_4 {dimension_numbers = #tpu.dot_dimension_numbers<[1], [0], [0], [1], [0, 0, 1, 1], [], []>} : vector<8x4xbf16>, vector<4x288xbf16>, vector<8x288xf32> -> vector<8x288xf32>
    %7 = arith.addf %3, %6 : vector<8x288xf32>
    %8 = vector.extract_strided_slice %1 {offsets = [0, 1], sizes = [4, 288], strides = [1, 1]} : vector<4x384xbf16> to vector<4x288xbf16>
    %9 = vector.extract_strided_slice %2 {offsets = [8, 0], sizes = [8, 4], strides = [1, 1]} : vector<72x4xbf16> to vector<8x4xbf16>
    %cst_5 = arith.constant dense<0.000000e+00> : vector<8x288xf32>
    %10 = tpu.matmul %9, %8, %cst_5 {dimension_numbers = #tpu.dot_dimension_numbers<[1], [0], [0], [1], [0, 0, 1, 1], [], []>} : vector<8x4xbf16>, vector<4x288xbf16>, vector<8x288xf32> -> vector<8x288xf32>
    %11 = arith.addf %7, %10 : vector<8x288xf32>
    %12 = vector.extract_strided_slice %1 {offsets = [0, 2], sizes = [4, 288], strides = [1, 1]} : vector<4x384xbf16> to vector<4x288xbf16>
    %13 = vector.extract_strided_slice %2 {offsets = [16, 0], sizes = [8, 4], strides = [1, 1]} : vector<72x4xbf16> to vector<8x4xbf16>
    %cst_6 = arith.constant dense<0.000000e+00> : vector<8x288xf32>
    %14 = tpu.matmul %13, %12, %cst_6 {dimension_numbers = #tpu.dot_dimension_numbers<[1], [0], [0], [1], [0, 0, 1, 1], [], []>} : vector<8x4xbf16>, vector<4x288xbf16>, vector<8x288xf32> -> vector<8x288xf32>
    %15 = arith.addf %11, %14 : vector<8x288xf32>
    %16 = vector.extract_strided_slice %1 {offsets = [0, 18], sizes = [4, 288], strides = [1, 1]} : vector<4x384xbf16> to vector<4x288xbf16>
    %17 = vector.extract_strided_slice %2 {offsets = [24, 0], sizes = [8, 4], strides = [1, 1]} : vector<72x4xbf16> to vector<8x4xbf16>
    %cst_7 = arith.constant dense<0.000000e+00> : vector<8x288xf32>
    %18 = tpu.matmul %17, %16, %cst_7 {dimension_numbers = #tpu.dot_dimension_numbers<[1], [0], [0], [1], [0, 0, 1, 1], [], []>} : vector<8x4xbf16>, vector<4x288xbf16>, vector<8x288xf32> -> vector<8x288xf32>
    %19 = arith.addf %15, %18 : vector<8x288xf32>
    %20 = vector.extract_strided_slice %1 {offsets = [0, 19], sizes = [4, 288], strides = [1, 1]} : vector<4x384xbf16> to vector<4x288xbf16>
    %21 = vector.extract_strided_slice %2 {offsets = [32, 0], sizes = [8, 4], strides = [1, 1]} : vector<72x4xbf16> to vector<8x4xbf16>
    %cst_8 = arith.constant dense<0.000000e+00> : vector<8x288xf32>
    %22 = tpu.matmul %21, %20, %cst_8 {dimension_numbers = #tpu.dot_dimension_numbers<[1], [0], [0], [1], [0, 0, 1, 1], [], []>} : vector<8x4xbf16>, vector<4x288xbf16>, vector<8x288xf32> -> vector<8x288xf32>
    %23 = arith.addf %19, %22 : vector<8x288xf32>
    %24 = vector.extract_strided_slice %1 {offsets = [0, 20], sizes = [4, 288], strides = [1, 1]} : vector<4x384xbf16> to vector<4x288xbf16>
    %25 = vector.extract_strided_slice %2 {offsets = [40, 0], sizes = [8, 4], strides = [1, 1]} : vector<72x4xbf16> to vector<8x4xbf16>
    %cst_9 = arith.constant dense<0.000000e+00> : vector<8x288xf32>
    %26 = tpu.matmul %25, %24, %cst_9 {dimension_numbers = #tpu.dot_dimension_numbers<[1], [0], [0], [1], [0, 0, 1, 1], [], []>} : vector<8x4xbf16>, vector<4x288xbf16>, vector<8x288xf32> -> vector<8x288xf32>
    %27 = arith.addf %23, %26 : vector<8x288xf32>
    %28 = vector.extract_strided_slice %1 {offsets = [0, 36], sizes = [4, 288], strides = [1, 1]} : vector<4x384xbf16> to vector<4x288xbf16>
    %29 = vector.extract_strided_slice %2 {offsets = [48, 0], sizes = [8, 4], strides = [1, 1]} : vector<72x4xbf16> to vector<8x4xbf16>
    %cst_10 = arith.constant dense<0.000000e+00> : vector<8x288xf32>
    %30 = tpu.matmul %29, %28, %cst_10 {dimension_numbers = #tpu.dot_dimension_numbers<[1], [0], [0], [1], [0, 0, 1, 1], [], []>} : vector<8x4xbf16>, vector<4x288xbf16>, vector<8x288xf32> -> vector<8x288xf32>
    %31 = arith.addf %27, %30 : vector<8x288xf32>
    %32 = vector.extract_strided_slice %1 {offsets = [0, 37], sizes = [4, 288], strides = [1, 1]} : vector<4x384xbf16> to vector<4x288xbf16>
    %33 = vector.extract_strided_slice %2 {offsets = [56, 0], sizes = [8, 4], strides = [1, 1]} : vector<72x4xbf16> to vector<8x4xbf16>
    %cst_11 = arith.constant dense<0.000000e+00> : vector<8x288xf32>
    %34 = tpu.matmul %33, %32, %cst_11 {dimension_numbers = #tpu.dot_dimension_numbers<[1], [0], [0], [1], [0, 0, 1, 1], [], []>} : vector<8x4xbf16>, vector<4x288xbf16>, vector<8x288xf32> -> vector<8x288xf32>
    %35 = arith.addf %31, %34 : vector<8x288xf32>
    %36 = vector.extract_strided_slice %1 {offsets = [0, 38], sizes = [4, 288], strides = [1, 1]} : vector<4x384xbf16> to vector<4x288xbf16>
    %37 = vector.extract_strided_slice %2 {offsets = [64, 0], sizes = [8, 4], strides = [1, 1]} : vector<72x4xbf16> to vector<8x4xbf16>
    %cst_12 = arith.constant dense<0.000000e+00> : vector<8x288xf32>
    %38 = tpu.matmul %37, %36, %cst_12 {dimension_numbers = #tpu.dot_dimension_numbers<[1], [0], [0], [1], [0, 0, 1, 1], [], []>} : vector<8x4xbf16>, vector<4x288xbf16>, vector<8x288xf32> -> vector<8x288xf32>
    %39 = arith.addf %35, %38 : vector<8x288xf32>
    %c0_13 = arith.constant 0 : index
    %c0_14 = arith.constant 0 : index
    %40 = vector.load %arg3[%c0_13, %c0_14] : memref<64x128xf32, #tpu.memory_space<vmem>>, vector<8x1xf32>
    %41 = vector.broadcast %40 : vector<8x1xf32> to vector<8x288xf32>
    %42 = arith.addf %39, %41 : vector<8x288xf32>
    %cst_15 = arith.constant 0.000000e+00 : f32
    %43 = vector.broadcast %cst_15 : f32 to vector<8x288xf32>
    %44 = arith.maximumf %42, %43 : vector<8x288xf32>
    %c0_16 = arith.constant 0 : index
    %c0_17 = arith.constant 0 : index
    %45 = vector.load %arg4[%c0_16, %c0_17] : memref<1x288xf32, #tpu.memory_space<vmem>>, vector<1x288xf32>
    %46 = vector.broadcast %45 : vector<1x288xf32> to vector<8x288xf32>
    %47 = arith.mulf %44, %46 : vector<8x288xf32>
    %cst_18 = arith.constant dense<0.000000e+00> : vector<8xf32>
    %48 = vector.multi_reduction <add>, %47, %cst_18 [1] : vector<8x288xf32> to vector<8xf32>
    %49 = vector.shape_cast %48 : vector<8xf32> to vector<1x8xf32>
    %c8 = arith.constant 8 : index
    %c0_19 = arith.constant 0 : index
    %50 = vector.load %arg3[%c8, %c0_19] : memref<64x128xf32, #tpu.memory_space<vmem>>, vector<8x32xf32>
    %c16 = arith.constant 16 : index
    %c0_20 = arith.constant 0 : index
    %51 = vector.load %arg3[%c16, %c0_20] : memref<64x128xf32, #tpu.memory_space<vmem>>, vector<1x32xf32>
    %cst_21 = arith.constant dense<0.000000e+00> : vector<1x32xf32>
    %52 = tpu.matmul %49, %50, %cst_21 {dimension_numbers = #tpu.dot_dimension_numbers<[1], [0], [0], [1], [0, 0, 1, 1], [], []>} : vector<1x8xf32>, vector<8x32xf32>, vector<1x32xf32> -> vector<1x32xf32>
    %53 = arith.addf %52, %51 : vector<1x32xf32>
    %cst_22 = arith.constant 0.000000e+00 : f32
    %54 = vector.broadcast %cst_22 : f32 to vector<1x32xf32>
    %55 = arith.maximumf %53, %54 : vector<1x32xf32>
    %c24 = arith.constant 24 : index
    %c0_23 = arith.constant 0 : index
    %56 = vector.load %arg3[%c24, %c0_23] : memref<64x128xf32, #tpu.memory_space<vmem>>, vector<32x128xf32>
    %c56 = arith.constant 56 : index
    %c0_24 = arith.constant 0 : index
    %57 = vector.load %arg3[%c56, %c0_24] : memref<64x128xf32, #tpu.memory_space<vmem>>, vector<1x128xf32>
    %cst_25 = arith.constant dense<0.000000e+00> : vector<1x128xf32>
    %58 = tpu.matmul %55, %56, %cst_25 {dimension_numbers = #tpu.dot_dimension_numbers<[1], [0], [0], [1], [0, 0, 1, 1], [], []>} : vector<1x32xf32>, vector<32x128xf32>, vector<1x128xf32> -> vector<1x128xf32>
    %59 = arith.addf %58, %57 : vector<1x128xf32>
    %60 = vector.shape_cast %59 : vector<1x128xf32> to vector<1x1x128xf32>
    %c0_26 = arith.constant 0 : index
    %c0_27 = arith.constant 0 : index
    %c0_28 = arith.constant 0 : index
    %61 = vector.load %arg5[%c0_26, %c0_27, %c0_28] : memref<1x1x128xf32, #tpu.memory_space<vmem>>, vector<1x1x128xf32>
    tpu.vector_store %arg5[%c0_26, %c0_27, %c0_28], %60 {strides = array<i32>} : memref<1x1x128xf32, #tpu.memory_space<vmem>>, vector<1x1x128xf32>,
    return
  }
  func.func @transform_0(%arg0: i32) -> (i32, i32, i32) {
    %c0_i32 = arith.constant 0 : i32
    %c0_i32_0 = arith.constant 0 : i32
    %c0_i32_1 = arith.constant 0 : i32
    return %arg0, %c0_i32, %c0_i32_0 : i32, i32, i32
  }
  func.func @transform_1(%arg0: i32) -> (i32, i32) {
    %c0_i32 = arith.constant 0 : i32
    %c0_i32_0 = arith.constant 0 : i32
    %c0_i32_1 = arith.constant 0 : i32
    return %c0_i32, %c0_i32_0 : i32, i32
  }
  func.func @transform_2(%arg0: i32) -> (i32, i32) {
    %c0_i32 = arith.constant 0 : i32
    %c0_i32_0 = arith.constant 0 : i32
    %c0_i32_1 = arith.constant 0 : i32
    return %c0_i32, %c0_i32_0 : i32, i32
  }
  func.func @transform_3(%arg0: i32) -> (i32, i32) {
    %c0_i32 = arith.constant 0 : i32
    %c0_i32_0 = arith.constant 0 : i32
    %c0_i32_1 = arith.constant 0 : i32
    return %c0_i32, %c0_i32_0 : i32, i32
  }
  func.func @transform_4(%arg0: i32) -> (i32, i32, i32) {
    %c0_i32 = arith.constant 0 : i32
    %c0_i32_0 = arith.constant 0 : i32
    %c0_i32_1 = arith.constant 0 : i32
    return %arg0, %c0_i32, %c0_i32_0 : i32, i32, i32
  }
}

</mosaic_0001>

<llo_original>
// kernel: tpu_custom_call.1
$region0: #{tpu_custom_call.1}
  #allocation0 [shape = 'u32[]', space=smem, size = 0x4, offset = 0x4, fixed_abs, tag = 'smem constant byte address 0x4 - core index']
  #allocation1 [shape = 'u32[144,128]{1,0:T(1,128)}', space=vmem, size = 0x12000, scoped, tag = 'internal scratch']
  %s0 = inlined_call_operand.vmem [shape: bf16[2,4,384], index: 0, kind: input, shape index: {}]
  %s1 = inlined_call_operand.vmem [shape: bf16[72,4], index: 1, kind: input, shape index: {}]
  %s2 = inlined_call_operand.hbm [shape: f32[64,128], index: 2, kind: input, shape index: {}]
  %s3 = inlined_call_operand.vmem [shape: f32[1,288], index: 3, kind: input, shape index: {}]
  %s4 = inlined_call_operand.hbm [shape: f32[2,1,128], index: 4, kind: output, shape index: {}]
  %s5 = sld [smem:[#allocation0]]
  $region53: #{tpu_custom_call.1} parent=0
    _
  %s7 = ssub.s32 1, %s5
  %s8 = scalar_select 0, %s7, %s5
  $region1: #{tpu_custom_call.1} parent=0
    #allocation2 [shape = 'u8[32768]{0}', space=vmem, size = 0x8000, scoped, tag = 'input window, operand 2, single buffered']
    #allocation3 [shape = 's32[2]{0}', space=sflag, size = 0x8, scoped, tag = 'scoped memory for tpu_custom_call.1']
    #allocation4 [shape = 's32[2]{0}', space=sflag, size = 0x8, scoped, tag = 'scoped memory for tpu_custom_call.1']
    #allocation5 [shape = 'u8[1024]{0}', space=vmem, size = 0x400, scoped, tag = 'output window, operand 0']
    %9 = vsyncpa [#allocation3], 0
    %10 = vsyncpa [#allocation4], 0
    %s11 = scalar_lea.sflag [#allocation4], 1
    %12 = vsyncpa %s11, 0
    loop: start=0, step=1, limit=4
    $region2: #{tpu_custom_call.1} parent=1 // loop_pre_header
      _
    $region3: #{tpu_custom_call.1} parent=1 // loop_header
      %s14 = sphi 0, %s18
      %p15 = scmp.ge.s32.totalorder %s14, 4
      %s24 = sphi 0, %s26
      %s27 = sphi 0, %s24
      %s28 = sphi 0, %s27
      %s44 = sphi 0, %s28
      %s48 = sphi 0, %s48
      %s50 = sphi 0, %s48
      %s51 = sphi 0, %s50
      %s65 = sphi 0, %s51
      %s69 = sphi 0, %s69
      %s71 = sphi 0, %s69
      %s72 = sphi 0, %s71
      %s86 = sphi 0, %s72
      %s90 = sphi 0, %s90
      %s92 = sphi 0, %s90
      %s93 = sphi 0, %s92
      %s107 = sphi 0, %s93
      %s113 = sphi 0, %s115
      %s116 = sphi 0, %s113
      %s117 = sphi 0, %s116
      %s133 = sphi 0, %s117
    $region4: #{tpu_custom_call.1} parent=1 // loop_header_branch
      %17 = sbr.rel (%p15) target = $region8
    $region5: #{tpu_custom_call.1} parent=1 // loop_body
      %s19 = ssub.s32 %s14, 1
      %s20 = ssub.s32 %s14, 2
      %s21 = sadd.s32 %s14, 1
      %s22 = ssub.s32 %s14, %s21
      %p23 = scmp.eq.s32.totalorder %s22, 0
      %s25 = sadd.s32 %s24, 1
      %s26 = scalar_select %p23, %s24, %s25
      %p29 = pneg %p23
      %p30 = scmp.eq.s32.totalorder %s14, 1
      %p31 = por %p29, %p30
      %p32 = scmp.ne.s32.totalorder %s24, %s27
      %p33 = scmp.eq.s32.totalorder %s14, 0
      %p34 = por %p32, %p33
      %p35 = scmp.ne.s32.totalorder %s24, %s27
      %p36 = scmp.eq.s32.totalorder %s19, 1
      %p37 = por %p35, %p36
      %p38 = scmp.ne.s32.totalorder %s27, %s28
      %p39 = scmp.eq.s32.totalorder %s19, 0
      %p40 = por %p38, %p39
      %p41 = scmp.ne.s32.totalorder %s27, %s28
      %p42 = scmp.eq.s32.totalorder %s20, 1
      %p43 = por %p41, %p42
      %p45 = scmp.ne.s32.totalorder %s28, %s44
      %p46 = scmp.eq.s32.totalorder %s20, 0
      %p47 = por %p45, %p46
      %s49 = sadd.s32 %s48, 1
      %p52 = scmp.eq.s32.totalorder %s14, 1
      %p53 = scmp.ne.s32.totalorder %s48, %s50
      %p54 = scmp.eq.s32.totalorder %s14, 0
      %p55 = por %p53, %p54
      %p56 = scmp.ne.s32.totalorder %s48, %s50
      %p57 = scmp.eq.s32.totalorder %s19, 1
      %p58 = por %p56, %p57
      %p59 = scmp.ne.s32.totalorder %s50, %s51
      %p60 = scmp.eq.s32.totalorder %s19, 0
      %p61 = por %p59, %p60
      %p62 = scmp.ne.s32.totalorder %s50, %s51
      %p63 = scmp.eq.s32.totalorder %s20, 1
      %p64 = por %p62, %p63
      %p66 = scmp.ne.s32.totalorder %s51, %s65
      %p67 = scmp.eq.s32.totalorder %s20, 0
      %p68 = por %p66, %p67
      %s70 = sadd.s32 %s69, 1
      %p73 = scmp.eq.s32.totalorder %s14, 1
      %p74 = scmp.ne.s32.totalorder %s69, %s71
      %p75 = scmp.eq.s32.totalorder %s14, 0
      %p76 = por %p74, %p75
      %p77 = scmp.ne.s32.totalorder %s69, %s71
      %p78 = scmp.eq.s32.totalorder %s19, 1
      %p79 = por %p77, %p78
      %p80 = scmp.ne.s32.totalorder %s71, %s72
      %p81 = scmp.eq.s32.totalorder %s19, 0
      %p82 = por %p80, %p81
      %p83 = scmp.ne.s32.totalorder %s71, %s72
      %p84 = scmp.eq.s32.totalorder %s20, 1
      %p85 = por %p83, %p84
      %p87 = scmp.ne.s32.totalorder %s72, %s86
      %p88 = scmp.eq.s32.totalorder %s20, 0
      %p89 = por %p87, %p88
      %s91 = sadd.s32 %s90, 1
      %p94 = scmp.eq.s32.totalorder %s14, 1
      %p95 = scmp.ne.s32.totalorder %s90, %s92
      %p96 = scmp.eq.s32.totalorder %s14, 0
      %p97 = por %p95, %p96
      %p98 = scmp.ne.s32.totalorder %s90, %s92
      %p99 = scmp.eq.s32.totalorder %s19, 1
      %p100 = por %p98, %p99
      %p101 = scmp.ne.s32.totalorder %s92, %s93
      %p102 = scmp.eq.s32.totalorder %s19, 0
      %p103 = por %p101, %p102
      %p104 = scmp.ne.s32.totalorder %s92, %s93
      %p105 = scmp.eq.s32.totalorder %s20, 1
      %p106 = por %p104, %p105
      %p108 = scmp.ne.s32.totalorder %s93, %s107
      %p109 = scmp.eq.s32.totalorder %s20, 0
      %p110 = por %p108, %p109
      %s111 = ssub.s32 %s14, %s21
      %p112 = scmp.eq.s32.totalorder %s111, 0
      %s114 = sadd.s32 %s113, 1
      %s115 = scalar_select %p112, %s113, %s114
      %p118 = pneg %p112
      %p119 = scmp.eq.s32.totalorder %s14, 1
      %p120 = por %p118, %p119
      %p121 = scmp.ne.s32.totalorder %s113, %s116
      %p122 = scmp.eq.s32.totalorder %s14, 0
      %p123 = por %p121, %p122
      %p124 = scmp.ne.s32.totalorder %s113, %s116
      %p125 = scmp.eq.s32.totalorder %s19, 1
      %p126 = por %p124, %p125
      %p127 = scmp.ne.s32.totalorder %s116, %s117
      %p128 = scmp.eq.s32.totalorder %s19, 0
      %p129 = por %p127, %p128
      %p130 = scmp.ne.s32.totalorder %s116, %s117
      %p131 = scmp.eq.s32.totalorder %s20, 1
      %p132 = por %p130, %p131
      %p134 = scmp.ne.s32.totalorder %s117, %s133
      %p135 = scmp.eq.s32.totalorder %s20, 0
      %p136 = por %p134, %p135
      %p137 = scmp.le.s32.totalorder 1, %s14
      %p138 = scmp.lt.s32.totalorder %s14, 3
      %p139 = pnand %p137, %p138
      %p140 = pneg %p139
      // Predicated region
      $region9: #{tpu_custom_call.1} parent=5 // pred_check
        _
      $region10: #{tpu_custom_call.1} parent=5 // pred_check_branch
        %142 = sbr.rel (%p139) target = $region12
      $region11: #{tpu_custom_call.1} parent=5 // pred_region
        %s143 = ssub.s32 %s14, 1
        // Predicated region
        $region13: #{tpu_custom_call.1} parent=11 // pred_check
          %p144 = pneg %p61
        $region14: #{tpu_custom_call.1} parent=11 // pred_check_branch
          %146 = sbr.rel (%p144) target = $region16
        $region15: #{tpu_custom_call.1} parent=11 // pred_region
          _
        $region16: #{tpu_custom_call.1} parent=11 // pred_fallthru
          _
        // Predicated region
        $region17: #{tpu_custom_call.1} parent=11 // pred_check
          %p147 = pneg %p82
        $region18: #{tpu_custom_call.1} parent=11 // pred_check_branch
          %149 = sbr.rel (%p147) target = $region20
        $region19: #{tpu_custom_call.1} parent=11 // pred_region
          %s151 = ssub.s32 1024, 1024
          %152 = vsyncadd [#allocation3], %s151
          %s153 = sshll.u32 [#allocation2], 4
          %s154 = int_to_ptr.vmem [resolvable:$true] %s153
          %159 = dma.hbm_to_vmem [thread:$0]  %s2, 1024, %s154, [#allocation3], 128, 128, 8
        $region20: #{tpu_custom_call.1} parent=11 // pred_fallthru
          _
        // Predicated region
        $region21: #{tpu_custom_call.1} parent=11 // pred_check
          %p160 = pneg %p103
        $region22: #{tpu_custom_call.1} parent=11 // pred_check_branch
          %162 = sbr.rel (%p160) target = $region24
        $region23: #{tpu_custom_call.1} parent=11 // pred_region
          _
        $region24: #{tpu_custom_call.1} parent=11 // pred_fallthru
          _
      $region12: #{tpu_custom_call.1} parent=5 // pred_fallthru
        _
      %p163 = scmp.lt.s32.totalorder %s14, 2
      // Predicated region
      $region25: #{tpu_custom_call.1} parent=5 // pred_check
        %p164 = pneg %p163
      $region26: #{tpu_custom_call.1} parent=5 // pred_check_branch
        %166 = sbr.rel (%p164) target = $region28
      $region27: #{tpu_custom_call.1} parent=5 // pred_region
        // Predicated region
        $region29: #{tpu_custom_call.1} parent=27 // pred_check
          %p167 = pneg %p34
        $region30: #{tpu_custom_call.1} parent=27 // pred_check_branch
          %169 = sbr.rel (%p167) target = $region32
        $region31: #{tpu_custom_call.1} parent=27 // pred_region
          %p170 = scmp.lt.s32.totalorder %s14, 1
          %s171 = scalar_select %p170, %s14, 1
          %s172 = smul.addr %s171, 3
          %s173 = smul.addr %s172, 2
          %s174 = scalar_lea.vmem %s0, %s173
        $region32: #{tpu_custom_call.1} parent=27 // pred_fallthru
          _
      $region28: #{tpu_custom_call.1} parent=5 // pred_fallthru
        _
      %p175 = scmp.le.s32.totalorder 1, %s14
      %p176 = scmp.lt.s32.totalorder %s14, 3
      %p177 = pnand %p175, %p176
      %p178 = pneg %p177
      // Predicated region
      $region33: #{tpu_custom_call.1} parent=5 // pred_check
        _
      $region34: #{tpu_custom_call.1} parent=5 // pred_check_branch
        %180 = sbr.rel (%p177) target = $region36
      $region35: #{tpu_custom_call.1} parent=5 // pred_region
        %s181 = ssub.s32 %s14, 1
        // Predicated region
        $region37: #{tpu_custom_call.1} parent=35 // pred_check
          %p182 = pneg %p82
        $region38: #{tpu_custom_call.1} parent=35 // pred_check_branch
          %184 = sbr.rel (%p182) target = $region40
        $region39: #{tpu_custom_call.1} parent=35 // pred_region
          %185 = dma.done [#allocation3], 1024
        $region40: #{tpu_custom_call.1} parent=35 // pred_fallthru
          _
        %p186 = scmp.lt.s32.totalorder %s19, 1
        %s187 = scalar_select %p186, %s19, 1
        %s188 = smul.addr %s187, 3
        %s189 = smul.addr %s188, 2
        %s190 = scalar_lea.vmem %s0, %s189
        %p191 = pneg %p40
        %p192 = pneg %p37
        %p193 = pneg %p61
        %p194 = pneg %p58
        %p195 = pneg %p82
        %p196 = pneg %p79
        %p197 = pneg %p103
        %p198 = pneg %p100
        %p199 = pneg %p129
        %p200 = pneg %p126
        %s201 = sand.u32 %s116, 1
        %s202 = scalar_lea.sflag [#allocation4], %s201
        %s203 = sand.u32 %s116, 1
        %s204 = scalar_lea.vmem [#allocation5], %s203
        %p205 = scmp.lt.s32.totalorder %s19, 1
        %s206 = scalar_select %p205, %s19, 1
        %s207 = smul.addr %s206, 3
        %s208 = smul.addr %s207, 2
        %s209 = scalar_lea.vmem %s0, %s208
        %v211 = vld [vmem:[%s209] sm:$0x3f]
        %v212 = vld [vmem:[%s1] sm:$0xf]
        %v213 = vld [vmem:[%s1 + $0x4] sm:$0xf]
        %v214 = vld [vmem:[%s1 + $0x8] sm:$0xf]
        %v215 = vld [vmem:[%s1 + $0xc] sm:$0xf]
        %v216 = vld [vmem:[%s1 + $0x10] sm:$0xf]
        %v217 = vld [vmem:[%s1 + $0x14] sm:$0xf]
        %v218 = vld [vmem:[%s1 + $0x18] sm:$0xf]
        %v219 = vld [vmem:[%s1 + $0x1c] sm:$0xf]
        %v220 = vld [vmem:[%s1 + $0x20] sm:$0xf]
        %v222 = vcombine.high %v211, %v211
        %v224 = vunpack.c.l.s4 1983009808
        %v225 = vunpack.c.0.s8 %v224
        %v226 = vlaneseq
        %v227 = vshrl.u32 %v226, 7
        %v228 = vsub.s32 %v225, %v227
        %v229 = vrot.slane %v211, %v228
        %v231 = vunpack.c.l.s4 1983009808
        %v232 = vunpack.c.0.s8 %v231
        %v233 = vlaneseq
        %v234 = vshrl.u32 %v233, 7
        %v235 = vsub.s32 %v232, %v234
        %v236 = vrot.slane %v222, %v235
        %v237 = vcombine.high %v229, %v229
        %238 = vrot.lane.b32.xlu0 %v229, 127
        %v239 = vpop.permute.xlu0 %238
        %240 = vrot.lane.b32.xlu0 %v237, 127
        %v241 = vpop.permute.xlu0 %240
        %242 = vrot.lane.b32.xlu0 %v236, 127
        %v243 = vpop.permute.xlu0 %242
        %vm244 = vcmask 1039360
        %v245 = vsel %vm244, %v239, %v241
        %v246 = vsel %vm244, %v241, %v243
        %vm247 = vcmask 31744
        %v249 = vsel %vm247, %v213, 0
        %vm251 = vcmask 1041408
        %v253 = vsel %vm251, %v245, 0
        %v256 = vsel %vm251, %v246, 0
        %v259 = vsel %vm251, %v243, 0
        %261 = vmatprep.subr.bf16.mxu0 0
        %262 = vmatpush1.bf16.msra.mxu0 0
        %263 = vmatprep.subr.bf16.mxu0 0
        %264 = vmatpush1.bf16.msra.mxu0 0
        %265 = vmatprep.subr.bf16.mxu0 0
        %266 = vmatpush1.bf16.msra.mxu0 0
        %267 = vmatprep.subr.bf16.mxu0 0
        %268 = vmatpush1.bf16.msra.mxu0 0
        %269 = vmatprep.subr.bf16.mxu0 0
        %270 = vmatpush1.bf16.msra.mxu0 0
        %271 = vmatprep.subr.bf16.mxu0 0
        %272 = vmatpush1.bf16.msra.mxu0 0
        %273 = vmatprep.subr.bf16.mxu0 0
        %274 = vmatpush1.bf16.msra.mxu0 0
        %275 = vmatprep.subr.bf16.mxu0 %v256
        %276 = vmatpush1.bf16.msra.mxu0 %v253
        %277 = vmatprep.subr.bf16.mxu0 0
        %278 = vmatpush2.bf16.msra.mxu0 0
        %279 = vmatprep.subr.bf16.mxu0 0
        %280 = vmatpush2.bf16.msra.mxu0 0
        %281 = vmatprep.subr.bf16.mxu0 0
        %282 = vmatpush2.bf16.msra.mxu0 0
        %283 = vmatprep.subr.bf16.mxu0 0
        %284 = vmatpush2.bf16.msra.mxu0 0
        %285 = vmatprep.subr.bf16.mxu0 0
        %286 = vmatpush2.bf16.msra.mxu0 0
        %287 = vmatprep.subr.bf16.mxu0 0
        %288 = vmatpush2.bf16.msra.mxu0 0
        %289 = vmatprep.subr.bf16.mxu0 0
        %290 = vmatpush2.bf16.msra.mxu0 0
        %291 = vmatprep.subr.bf16.mxu0 0
        %292 = vmatpush2.bf16.msra.mxu0 0
        %293 = vmatprep.mubr.bf16.mxu0 0
        %294 = vmatmul.mubr.bf16.gmra.mxu0 %v249
        %v295 = vpop.f32.mrf.mxu0
        %v296 = vadd.f32 0.0, %v295
        %v297 = vpop.f32.mrf.mxu0
        %v298 = vadd.f32 0.0, %v297
        %v299 = vpop.f32.mrf.mxu0
        %v300 = vpop.f32.mrf.mxu0
        %301 = vdwg.mxu0
        %302 = vmatprep.subr.bf16.mxu0 0
        %303 = vmatpush1.bf16.msra.mxu0 0
        %304 = vmatprep.subr.bf16.mxu0 0
        %305 = vmatpush1.bf16.msra.mxu0 0
        %306 = vmatprep.subr.bf16.mxu0 0
        %307 = vmatpush1.bf16.msra.mxu0 0
        %308 = vmatprep.subr.bf16.mxu0 0
        %309 = vmatpush1.bf16.msra.mxu0 0
        %310 = vmatprep.subr.bf16.mxu0 0
        %311 = vmatpush1.bf16.msra.mxu0 0
        %312 = vmatprep.subr.bf16.mxu0 0
        %313 = vmatpush1.bf16.msra.mxu0 0
        %314 = vmatprep.subr.bf16.mxu0 0
        %315 = vmatpush1.bf16.msra.mxu0 0
        %316 = vmatprep.subr.bf16.mxu0 0
        %317 = vmatpush1.bf16.msra.mxu0 %v259
        %318 = vmatprep.subr.bf16.mxu0 0
        %319 = vmatpush2.bf16.msra.mxu0 0
        %320 = vmatprep.subr.bf16.mxu0 0
        %321 = vmatpush2.bf16.msra.mxu0 0
        %322 = vmatprep.subr.bf16.mxu0 0
        %323 = vmatpush2.bf16.msra.mxu0 0
        %324 = vmatprep.subr.bf16.mxu0 0
        %325 = vmatpush2.bf16.msra.mxu0 0
        %326 = vmatprep.subr.bf16.mxu0 0
        %327 = vmatpush2.bf16.msra.mxu0 0
        %328 = vmatprep.subr.bf16.mxu0 0
        %329 = vmatpush2.bf16.msra.mxu0 0
        %330 = vmatprep.subr.bf16.mxu0 0
        %331 = vmatpush2.bf16.msra.mxu0 0
        %332 = vmatprep.subr.bf16.mxu0 0
        %333 = vmatpush2.bf16.msra.mxu0 0
        %334 = vmatprep.mubr.bf16.mxu0 0
        %335 = vmatmul.mubr.bf16.gmra.mxu0 %v249
        %v336 = vpop.f32.mrf.mxu0
        %v337 = vadd.f32 0.0, %v336
        %v338 = vpop.f32.mrf.mxu0
        %v339 = vpop.f32.mrf.mxu0
        %v340 = vpop.f32.mrf.mxu0
        %341 = vdwg.mxu0
        %v343 = vsel %vm247, %v212, 0
        %v346 = vsel %vm251, %v229, 0
        %v349 = vsel %vm251, %v237, 0
        %v352 = vsel %vm251, %v236, 0
        %354 = vmatprep.subr.bf16.mxu0 0
        %355 = vmatpush1.bf16.msra.mxu0 0
        %356 = vmatprep.subr.bf16.mxu0 0
        %357 = vmatpush1.bf16.msra.mxu0 0
        %358 = vmatprep.subr.bf16.mxu0 0
        %359 = vmatpush1.bf16.msra.mxu0 0
        %360 = vmatprep.subr.bf16.mxu0 0
        %361 = vmatpush1.bf16.msra.mxu0 0
        %362 = vmatprep.subr.bf16.mxu0 0
        %363 = vmatpush1.bf16.msra.mxu0 0
        %364 = vmatprep.subr.bf16.mxu0 0
        %365 = vmatpush1.bf16.msra.mxu0 0
        %366 = vmatprep.subr.bf16.mxu0 0
        %367 = vmatpush1.bf16.msra.mxu0 0
        %368 = vmatprep.subr.bf16.mxu0 %v349
        %369 = vmatpush1.bf16.msra.mxu0 %v346
        %370 = vmatprep.subr.bf16.mxu0 0
        %371 = vmatpush2.bf16.msra.mxu0 0
        %372 = vmatprep.subr.bf16.mxu0 0
        %373 = vmatpush2.bf16.msra.mxu0 0
        %374 = vmatprep.subr.bf16.mxu0 0
        %375 = vmatpush2.bf16.msra.mxu0 0
        %376 = vmatprep.subr.bf16.mxu0 0
        %377 = vmatpush2.bf16.msra.mxu0 0
        %378 = vmatprep.subr.bf16.mxu0 0
        %379 = vmatpush2.bf16.msra.mxu0 0
        %380 = vmatprep.subr.bf16.mxu0 0
        %381 = vmatpush2.bf16.msra.mxu0 0
        %382 = vmatprep.subr.bf16.mxu0 0
        %383 = vmatpush2.bf16.msra.mxu0 0
        %384 = vmatprep.subr.bf16.mxu0 0
        %385 = vmatpush2.bf16.msra.mxu0 0
        %386 = vmatprep.mubr.bf16.mxu0 0
        %387 = vmatmul.mubr.bf16.gmra.mxu0 %v343
        %v388 = vpop.f32.mrf.mxu0
        %v389 = vadd.f32 %v296, %v388
        %v390 = vpop.f32.mrf.mxu0
        %v391 = vadd.f32 %v298, %v390
        %v392 = vpop.f32.mrf.mxu0
        %v393 = vpop.f32.mrf.mxu0
        %394 = vdwg.mxu0
        %395 = vmatprep.subr.bf16.mxu0 0
        %396 = vmatpush1.bf16.msra.mxu0 0
        %397 = vmatprep.subr.bf16.mxu0 0
        %398 = vmatpush1.bf16.msra.mxu0 0
        %399 = vmatprep.subr.bf16.mxu0 0
        %400 = vmatpush1.bf16.msra.mxu0 0
        %401 = vmatprep.subr.bf16.mxu0 0
        %402 = vmatpush1.bf16.msra.mxu0 0
        %403 = vmatprep.subr.bf16.mxu0 0
        %404 = vmatpush1.bf16.msra.mxu0 0
        %405 = vmatprep.subr.bf16.mxu0 0
        %406 = vmatpush1.bf16.msra.mxu0 0
        %407 = vmatprep.subr.bf16.mxu0 0
        %408 = vmatpush1.bf16.msra.mxu0 0
        %409 = vmatprep.subr.bf16.mxu0 0
        %410 = vmatpush1.bf16.msra.mxu0 %v352
        %411 = vmatprep.subr.bf16.mxu0 0
        %412 = vmatpush2.bf16.msra.mxu0 0
        %413 = vmatprep.subr.bf16.mxu0 0
        %414 = vmatpush2.bf16.msra.mxu0 0
        %415 = vmatprep.subr.bf16.mxu0 0
        %416 = vmatpush2.bf16.msra.mxu0 0
        %417 = vmatprep.subr.bf16.mxu0 0
        %418 = vmatpush2.bf16.msra.mxu0 0
        %419 = vmatprep.subr.bf16.mxu0 0
        %420 = vmatpush2.bf16.msra.mxu0 0
        %421 = vmatprep.subr.bf16.mxu0 0
        %422 = vmatpush2.bf16.msra.mxu0 0
        %423 = vmatprep.subr.bf16.mxu0 0
        %424 = vmatpush2.bf16.msra.mxu0 0
        %425 = vmatprep.subr.bf16.mxu0 0
        %426 = vmatpush2.bf16.msra.mxu0 0
        %427 = vmatprep.mubr.bf16.mxu0 0
        %428 = vmatmul.mubr.bf16.gmra.mxu0 %v343
        %v429 = vpop.f32.mrf.mxu0
        %v430 = vadd.f32 %v337, %v429
        %v431 = vpop.f32.mrf.mxu0
        %v432 = vpop.f32.mrf.mxu0
        %v433 = vpop.f32.mrf.mxu0
        %434 = vdwg.mxu0
        %435 = vrot.lane.b32.xlu0 %v229, 126
        %v436 = vpop.permute.xlu0 %435
        %437 = vrot.lane.b32.xlu0 %v237, 126
        %v438 = vpop.permute.xlu0 %437
        %439 = vrot.lane.b32.xlu0 %v236, 126
        %v440 = vpop.permute.xlu0 %439
        %vm441 = vcmask 1031168
        %v442 = vsel %vm441, %v436, %v438
        %v443 = vsel %vm441, %v438, %v440
        %v445 = vsel %vm247, %v214, 0
        %v448 = vsel %vm251, %v442, 0
        %v451 = vsel %vm251, %v443, 0
        %v454 = vsel %vm251, %v440, 0
        %456 = vmatprep.subr.bf16.mxu0 0
        %457 = vmatpush1.bf16.msra.mxu0 0
        %458 = vmatprep.subr.bf16.mxu0 0
        %459 = vmatpush1.bf16.msra.mxu0 0
        %460 = vmatprep.subr.bf16.mxu0 0
        %461 = vmatpush1.bf16.msra.mxu0 0
        %462 = vmatprep.subr.bf16.mxu0 0
        %463 = vmatpush1.bf16.msra.mxu0 0
        %464 = vmatprep.subr.bf16.mxu0 0
        %465 = vmatpush1.bf16.msra.mxu0 0
        %466 = vmatprep.subr.bf16.mxu0 0
        %467 = vmatpush1.bf16.msra.mxu0 0
        %468 = vmatprep.subr.bf16.mxu0 0
        %469 = vmatpush1.bf16.msra.mxu0 0
        %470 = vmatprep.subr.bf16.mxu0 %v451
        %471 = vmatpush1.bf16.msra.mxu0 %v448
        %472 = vmatprep.subr.bf16.mxu0 0
        %473 = vmatpush2.bf16.msra.mxu0 0
        %474 = vmatprep.subr.bf16.mxu0 0
        %475 = vmatpush2.bf16.msra.mxu0 0
        %476 = vmatprep.subr.bf16.mxu0 0
        %477 = vmatpush2.bf16.msra.mxu0 0
        %478 = vmatprep.subr.bf16.mxu0 0
        %479 = vmatpush2.bf16.msra.mxu0 0
        %480 = vmatprep.subr.bf16.mxu0 0
        %481 = vmatpush2.bf16.msra.mxu0 0
        %482 = vmatprep.subr.bf16.mxu0 0
        %483 = vmatpush2.bf16.msra.mxu0 0
        %484 = vmatprep.subr.bf16.mxu0 0
        %485 = vmatpush2.bf16.msra.mxu0 0
        %486 = vmatprep.subr.bf16.mxu0 0
        %487 = vmatpush2.bf16.msra.mxu0 0
        %488 = vmatprep.mubr.bf16.mxu0 0
        %489 = vmatmul.mubr.bf16.gmra.mxu0 %v445
        %v490 = vpop.f32.mrf.mxu0
        %v491 = vadd.f32 0.0, %v490
        %v492 = vpop.f32.mrf.mxu0
        %v493 = vadd.f32 0.0, %v492
        %v494 = vpop.f32.mrf.mxu0
        %v495 = vpop.f32.mrf.mxu0
        %496 = vdwg.mxu0
        %497 = vmatprep.subr.bf16.mxu0 0
        %498 = vmatpush1.bf16.msra.mxu0 0
        %499 = vmatprep.subr.bf16.mxu0 0
        %500 = vmatpush1.bf16.msra.mxu0 0
        %501 = vmatprep.subr.bf16.mxu0 0
        %502 = vmatpush1.bf16.msra.mxu0 0
        %503 = vmatprep.subr.bf16.mxu0 0
        %504 = vmatpush1.bf16.msra.mxu0 0
        %505 = vmatprep.subr.bf16.mxu0 0
        %506 = vmatpush1.bf16.msra.mxu0 0
        %507 = vmatprep.subr.bf16.mxu0 0
        %508 = vmatpush1.bf16.msra.mxu0 0
        %509 = vmatprep.subr.bf16.mxu0 0
        %510 = vmatpush1.bf16.msra.mxu0 0
        %511 = vmatprep.subr.bf16.mxu0 0
        %512 = vmatpush1.bf16.msra.mxu0 %v454
        %513 = vmatprep.subr.bf16.mxu0 0
        %514 = vmatpush2.bf16.msra.mxu0 0
        %515 = vmatprep.subr.bf16.mxu0 0
        %516 = vmatpush2.bf16.msra.mxu0 0
        %517 = vmatprep.subr.bf16.mxu0 0
        %518 = vmatpush2.bf16.msra.mxu0 0
        %519 = vmatprep.subr.bf16.mxu0 0
        %520 = vmatpush2.bf16.msra.mxu0 0
        %521 = vmatprep.subr.bf16.mxu0 0
        %522 = vmatpush2.bf16.msra.mxu0 0
        %523 = vmatprep.subr.bf16.mxu0 0
        %524 = vmatpush2.bf16.msra.mxu0 0
        %525 = vmatprep.subr.bf16.mxu0 0
        %526 = vmatpush2.bf16.msra.mxu0 0
        %527 = vmatprep.subr.bf16.mxu0 0
        %528 = vmatpush2.bf16.msra.mxu0 0
        %529 = vmatprep.mubr.bf16.mxu0 0
        %530 = vmatmul.mubr.bf16.gmra.mxu0 %v445
        %v531 = vpop.f32.mrf.mxu0
        %v532 = vadd.f32 0.0, %v531
        %v533 = vpop.f32.mrf.mxu0
        %v534 = vpop.f32.mrf.mxu0
        %v535 = vpop.f32.mrf.mxu0
        %536 = vdwg.mxu0
        %v537 = vadd.f32 %v389, %v491
        %v538 = vadd.f32 %v391, %v493
        %v539 = vadd.f32 %v430, %v532
        %540 = vrot.lane.b32.xlu0 %v229, 110
        %v541 = vpop.permute.xlu0 %540
        %542 = vrot.lane.b32.xlu0 %v237, 110
        %v543 = vpop.permute.xlu0 %542
        %544 = vrot.lane.b32.xlu0 %v236, 110
        %v545 = vpop.permute.xlu0 %544
        %vm546 = vcmask 900096
        %v547 = vsel %vm546, %v541, %v543
        %v548 = vsel %vm546, %v543, %v545
        %v550 = vsel %vm247, %v215, 0
        %v553 = vsel %vm251, %v547, 0
        %v556 = vsel %vm251, %v548, 0
        %v559 = vsel %vm251, %v545, 0
        %561 = vmatprep.subr.bf16.mxu0 0
        %562 = vmatpush1.bf16.msra.mxu0 0
        %563 = vmatprep.subr.bf16.mxu0 0
        %564 = vmatpush1.bf16.msra.mxu0 0
        %565 = vmatprep.subr.bf16.mxu0 0
        %566 = vmatpush1.bf16.msra.mxu0 0
        %567 = vmatprep.subr.bf16.mxu0 0
        %568 = vmatpush1.bf16.msra.mxu0 0
        %569 = vmatprep.subr.bf16.mxu0 0
        %570 = vmatpush1.bf16.msra.mxu0 0
        %571 = vmatprep.subr.bf16.mxu0 0
        %572 = vmatpush1.bf16.msra.mxu0 0
        %573 = vmatprep.subr.bf16.mxu0 0
        %574 = vmatpush1.bf16.msra.mxu0 0
        %575 = vmatprep.subr.bf16.mxu0 %v556
        %576 = vmatpush1.bf16.msra.mxu0 %v553
        %577 = vmatprep.subr.bf16.mxu0 0
        %578 = vmatpush2.bf16.msra.mxu0 0
        %579 = vmatprep.subr.bf16.mxu0 0
        %580 = vmatpush2.bf16.msra.mxu0 0
        %581 = vmatprep.subr.bf16.mxu0 0
        %582 = vmatpush2.bf16.msra.mxu0 0
        %583 = vmatprep.subr.bf16.mxu0 0
        %584 = vmatpush2.bf16.msra.mxu0 0
        %585 = vmatprep.subr.bf16.mxu0 0
        %586 = vmatpush2.bf16.msra.mxu0 0
        %587 = vmatprep.subr.bf16.mxu0 0
        %588 = vmatpush2.bf16.msra.mxu0 0
        %589 = vmatprep.subr.bf16.mxu0 0
        %590 = vmatpush2.bf16.msra.mxu0 0
        %591 = vmatprep.subr.bf16.mxu0 0
        %592 = vmatpush2.bf16.msra.mxu0 0
        %593 = vmatprep.mubr.bf16.mxu0 0
        %594 = vmatmul.mubr.bf16.gmra.mxu0 %v550
        %v595 = vpop.f32.mrf.mxu0
        %v596 = vadd.f32 0.0, %v595
        %v597 = vpop.f32.mrf.mxu0
        %v598 = vadd.f32 0.0, %v597
        %v599 = vpop.f32.mrf.mxu0
        %v600 = vpop.f32.mrf.mxu0
        %601 = vdwg.mxu0
        %602 = vmatprep.subr.bf16.mxu0 0
        %603 = vmatpush1.bf16.msra.mxu0 0
        %604 = vmatprep.subr.bf16.mxu0 0
        %605 = vmatpush1.bf16.msra.mxu0 0
        %606 = vmatprep.subr.bf16.mxu0 0
        %607 = vmatpush1.bf16.msra.mxu0 0
        %608 = vmatprep.subr.bf16.mxu0 0
        %609 = vmatpush1.bf16.msra.mxu0 0
        %610 = vmatprep.subr.bf16.mxu0 0
        %611 = vmatpush1.bf16.msra.mxu0 0
        %612 = vmatprep.subr.bf16.mxu0 0
        %613 = vmatpush1.bf16.msra.mxu0 0
        %614 = vmatprep.subr.bf16.mxu0 0
        %615 = vmatpush1.bf16.msra.mxu0 0
        %616 = vmatprep.subr.bf16.mxu0 0
        %617 = vmatpush1.bf16.msra.mxu0 %v559
        %618 = vmatprep.subr.bf16.mxu0 0
        %619 = vmatpush2.bf16.msra.mxu0 0
        %620 = vmatprep.subr.bf16.mxu0 0
        %621 = vmatpush2.bf16.msra.mxu0 0
        %622 = vmatprep.subr.bf16.mxu0 0
        %623 = vmatpush2.bf16.msra.mxu0 0
        %624 = vmatprep.subr.bf16.mxu0 0
        %625 = vmatpush2.bf16.msra.mxu0 0
        %626 = vmatprep.subr.bf16.mxu0 0
        %627 = vmatpush2.bf16.msra.mxu0 0
        %628 = vmatprep.subr.bf16.mxu0 0
        %629 = vmatpush2.bf16.msra.mxu0 0
        %630 = vmatprep.subr.bf16.mxu0 0
        %631 = vmatpush2.bf16.msra.mxu0 0
        %632 = vmatprep.subr.bf16.mxu0 0
        %633 = vmatpush2.bf16.msra.mxu0 0
        %634 = vmatprep.mubr.bf16.mxu0 0
        %635 = vmatmul.mubr.bf16.gmra.mxu0 %v550
        %v636 = vpop.f32.mrf.mxu0
        %v637 = vadd.f32 0.0, %v636
        %v638 = vpop.f32.mrf.mxu0
        %v639 = vpop.f32.mrf.mxu0
        %v640 = vpop.f32.mrf.mxu0
        %641 = vdwg.mxu0
        %v642 = vadd.f32 %v537, %v596
        %v643 = vadd.f32 %v538, %v598
        %v644 = vadd.f32 %v539, %v637
        %645 = vrot.lane.b32.xlu0 %v229, 109
        %v646 = vpop.permute.xlu0 %645
        %647 = vrot.lane.b32.xlu0 %v237, 109
        %v648 = vpop.permute.xlu0 %647
        %649 = vrot.lane.b32.xlu0 %v236, 109
        %v650 = vpop.permute.xlu0 %649
        %vm651 = vcmask 891904
        %v652 = vsel %vm651, %v646, %v648
        %v653 = vsel %vm651, %v648, %v650
        %v655 = vsel %vm247, %v216, 0
        %v658 = vsel %vm251, %v652, 0
        %v661 = vsel %vm251, %v653, 0
        %v664 = vsel %vm251, %v650, 0
        %666 = vmatprep.subr.bf16.mxu0 0
        %667 = vmatpush1.bf16.msra.mxu0 0
        %668 = vmatprep.subr.bf16.mxu0 0
        %669 = vmatpush1.bf16.msra.mxu0 0
        %670 = vmatprep.subr.bf16.mxu0 0
        %671 = vmatpush1.bf16.msra.mxu0 0
        %672 = vmatprep.subr.bf16.mxu0 0
        %673 = vmatpush1.bf16.msra.mxu0 0
        %674 = vmatprep.subr.bf16.mxu0 0
        %675 = vmatpush1.bf16.msra.mxu0 0
        %676 = vmatprep.subr.bf16.mxu0 0
        %677 = vmatpush1.bf16.msra.mxu0 0
        %678 = vmatprep.subr.bf16.mxu0 0
        %679 = vmatpush1.bf16.msra.mxu0 0
        %680 = vmatprep.subr.bf16.mxu0 %v661
        %681 = vmatpush1.bf16.msra.mxu0 %v658
        %682 = vmatprep.subr.bf16.mxu0 0
        %683 = vmatpush2.bf16.msra.mxu0 0
        %684 = vmatprep.subr.bf16.mxu0 0
        %685 = vmatpush2.bf16.msra.mxu0 0
        %686 = vmatprep.subr.bf16.mxu0 0
        %687 = vmatpush2.bf16.msra.mxu0 0
        %688 = vmatprep.subr.bf16.mxu0 0
        %689 = vmatpush2.bf16.msra.mxu0 0
        %690 = vmatprep.subr.bf16.mxu0 0
        %691 = vmatpush2.bf16.msra.mxu0 0
        %692 = vmatprep.subr.bf16.mxu0 0
        %693 = vmatpush2.bf16.msra.mxu0 0
        %694 = vmatprep.subr.bf16.mxu0 0
        %695 = vmatpush2.bf16.msra.mxu0 0
        %696 = vmatprep.subr.bf16.mxu0 0
        %697 = vmatpush2.bf16.msra.mxu0 0
        %698 = vmatprep.mubr.bf16.mxu0 0
        %699 = vmatmul.mubr.bf16.gmra.mxu0 %v655
        %v700 = vpop.f32.mrf.mxu0
        %v701 = vadd.f32 0.0, %v700
        %v702 = vpop.f32.mrf.mxu0
        %v703 = vadd.f32 0.0, %v702
        %v704 = vpop.f32.mrf.mxu0
        %v705 = vpop.f32.mrf.mxu0
        %706 = vdwg.mxu0
        %707 = vmatprep.subr.bf16.mxu0 0
        %708 = vmatpush1.bf16.msra.mxu0 0
        %709 = vmatprep.subr.bf16.mxu0 0
        %710 = vmatpush1.bf16.msra.mxu0 0
        %711 = vmatprep.subr.bf16.mxu0 0
        %712 = vmatpush1.bf16.msra.mxu0 0
        %713 = vmatprep.subr.bf16.mxu0 0
        %714 = vmatpush1.bf16.msra.mxu0 0
        %715 = vmatprep.subr.bf16.mxu0 0
        %716 = vmatpush1.bf16.msra.mxu0 0
        %717 = vmatprep.subr.bf16.mxu0 0
        %718 = vmatpush1.bf16.msra.mxu0 0
        %719 = vmatprep.subr.bf16.mxu0 0
        %720 = vmatpush1.bf16.msra.mxu0 0
        %721 = vmatprep.subr.bf16.mxu0 0
        %722 = vmatpush1.bf16.msra.mxu0 %v664
        %723 = vmatprep.subr.bf16.mxu0 0
        %724 = vmatpush2.bf16.msra.mxu0 0
        %725 = vmatprep.subr.bf16.mxu0 0
        %726 = vmatpush2.bf16.msra.mxu0 0
        %727 = vmatprep.subr.bf16.mxu0 0
        %728 = vmatpush2.bf16.msra.mxu0 0
        %729 = vmatprep.subr.bf16.mxu0 0
        %730 = vmatpush2.bf16.msra.mxu0 0
        %731 = vmatprep.subr.bf16.mxu0 0
        %732 = vmatpush2.bf16.msra.mxu0 0
        %733 = vmatprep.subr.bf16.mxu0 0
        %734 = vmatpush2.bf16.msra.mxu0 0
        %735 = vmatprep.subr.bf16.mxu0 0
        %736 = vmatpush2.bf16.msra.mxu0 0
        %737 = vmatprep.subr.bf16.mxu0 0
        %738 = vmatpush2.bf16.msra.mxu0 0
        %739 = vmatprep.mubr.bf16.mxu0 0
        %740 = vmatmul.mubr.bf16.gmra.mxu0 %v655
        %v741 = vpop.f32.mrf.mxu0
        %v742 = vadd.f32 0.0, %v741
        %v743 = vpop.f32.mrf.mxu0
        %v744 = vpop.f32.mrf.mxu0
        %v745 = vpop.f32.mrf.mxu0
        %746 = vdwg.mxu0
        %v747 = vadd.f32 %v642, %v701
        %v748 = vadd.f32 %v643, %v703
        %v749 = vadd.f32 %v644, %v742
        %750 = vrot.lane.b32.xlu0 %v229, 108
        %v751 = vpop.permute.xlu0 %750
        %752 = vrot.lane.b32.xlu0 %v237, 108
        %v753 = vpop.permute.xlu0 %752
        %754 = vrot.lane.b32.xlu0 %v236, 108
        %v755 = vpop.permute.xlu0 %754
        %vm756 = vcmask 883712
        %v757 = vsel %vm756, %v751, %v753
        %v758 = vsel %vm756, %v753, %v755
        %v760 = vsel %vm247, %v217, 0
        %v763 = vsel %vm251, %v757, 0
        %v766 = vsel %vm251, %v758, 0
        %v769 = vsel %vm251, %v755, 0
        %771 = vmatprep.subr.bf16.mxu0 0
        %772 = vmatpush1.bf16.msra.mxu0 0
        %773 = vmatprep.subr.bf16.mxu0 0
        %774 = vmatpush1.bf16.msra.mxu0 0
        %775 = vmatprep.subr.bf16.mxu0 0
        %776 = vmatpush1.bf16.msra.mxu0 0
        %777 = vmatprep.subr.bf16.mxu0 0
        %778 = vmatpush1.bf16.msra.mxu0 0
        %779 = vmatprep.subr.bf16.mxu0 0
        %780 = vmatpush1.bf16.msra.mxu0 0
        %781 = vmatprep.subr.bf16.mxu0 0
        %782 = vmatpush1.bf16.msra.mxu0 0
        %783 = vmatprep.subr.bf16.mxu0 0
        %784 = vmatpush1.bf16.msra.mxu0 0
        %785 = vmatprep.subr.bf16.mxu0 %v766
        %786 = vmatpush1.bf16.msra.mxu0 %v763
        %787 = vmatprep.subr.bf16.mxu0 0
        %788 = vmatpush2.bf16.msra.mxu0 0
        %789 = vmatprep.subr.bf16.mxu0 0
        %790 = vmatpush2.bf16.msra.mxu0 0
        %791 = vmatprep.subr.bf16.mxu0 0
        %792 = vmatpush2.bf16.msra.mxu0 0
        %793 = vmatprep.subr.bf16.mxu0 0
        %794 = vmatpush2.bf16.msra.mxu0 0
        %795 = vmatprep.subr.bf16.mxu0 0
        %796 = vmatpush2.bf16.msra.mxu0 0
        %797 = vmatprep.subr.bf16.mxu0 0
        %798 = vmatpush2.bf16.msra.mxu0 0
        %799 = vmatprep.subr.bf16.mxu0 0
        %800 = vmatpush2.bf16.msra.mxu0 0
        %801 = vmatprep.subr.bf16.mxu0 0
        %802 = vmatpush2.bf16.msra.mxu0 0
        %803 = vmatprep.mubr.bf16.mxu0 0
        %804 = vmatmul.mubr.bf16.gmra.mxu0 %v760
        %v805 = vpop.f32.mrf.mxu0
        %v806 = vadd.f32 0.0, %v805
        %v807 = vpop.f32.mrf.mxu0
        %v808 = vadd.f32 0.0, %v807
        %v809 = vpop.f32.mrf.mxu0
        %v810 = vpop.f32.mrf.mxu0
        %811 = vdwg.mxu0
        %812 = vmatprep.subr.bf16.mxu0 0
        %813 = vmatpush1.bf16.msra.mxu0 0
        %814 = vmatprep.subr.bf16.mxu0 0
        %815 = vmatpush1.bf16.msra.mxu0 0
        %816 = vmatprep.subr.bf16.mxu0 0
        %817 = vmatpush1.bf16.msra.mxu0 0
        %818 = vmatprep.subr.bf16.mxu0 0
        %819 = vmatpush1.bf16.msra.mxu0 0
        %820 = vmatprep.subr.bf16.mxu0 0
        %821 = vmatpush1.bf16.msra.mxu0 0
        %822 = vmatprep.subr.bf16.mxu0 0
        %823 = vmatpush1.bf16.msra.mxu0 0
        %824 = vmatprep.subr.bf16.mxu0 0
        %825 = vmatpush1.bf16.msra.mxu0 0
        %826 = vmatprep.subr.bf16.mxu0 0
        %827 = vmatpush1.bf16.msra.mxu0 %v769
        %828 = vmatprep.subr.bf16.mxu0 0
        %829 = vmatpush2.bf16.msra.mxu0 0
        %830 = vmatprep.subr.bf16.mxu0 0
        %831 = vmatpush2.bf16.msra.mxu0 0
        %832 = vmatprep.subr.bf16.mxu0 0
        %833 = vmatpush2.bf16.msra.mxu0 0
        %834 = vmatprep.subr.bf16.mxu0 0
        %835 = vmatpush2.bf16.msra.mxu0 0
        %836 = vmatprep.subr.bf16.mxu0 0
        %837 = vmatpush2.bf16.msra.mxu0 0
        %838 = vmatprep.subr.bf16.mxu0 0
        %839 = vmatpush2.bf16.msra.mxu0 0
        %840 = vmatprep.subr.bf16.mxu0 0
        %841 = vmatpush2.bf16.msra.mxu0 0
        %842 = vmatprep.subr.bf16.mxu0 0
        %843 = vmatpush2.bf16.msra.mxu0 0
        %844 = vmatprep.mubr.bf16.mxu0 0
        %845 = vmatmul.mubr.bf16.gmra.mxu0 %v760
        %v846 = vpop.f32.mrf.mxu0
        %v847 = vadd.f32 0.0, %v846
        %v848 = vpop.f32.mrf.mxu0
        %v849 = vpop.f32.mrf.mxu0
        %v850 = vpop.f32.mrf.mxu0
        %851 = vdwg.mxu0
        %v852 = vadd.f32 %v747, %v806
        %v853 = vadd.f32 %v748, %v808
        %v854 = vadd.f32 %v749, %v847
        %855 = vrot.lane.b32.xlu0 %v229, 92
        %v856 = vpop.permute.xlu0 %855
        %857 = vrot.lane.b32.xlu0 %v237, 92
        %v858 = vpop.permute.xlu0 %857
        %859 = vrot.lane.b32.xlu0 %v236, 92
        %v860 = vpop.permute.xlu0 %859
        %vm861 = vcmask 752640
        %v862 = vsel %vm861, %v856, %v858
        %v863 = vsel %vm861, %v858, %v860
        %v865 = vsel %vm247, %v218, 0
        %v868 = vsel %vm251, %v862, 0
        %v871 = vsel %vm251, %v863, 0
        %v874 = vsel %vm251, %v860, 0
        %876 = vmatprep.subr.bf16.mxu0 0
        %877 = vmatpush1.bf16.msra.mxu0 0
        %878 = vmatprep.subr.bf16.mxu0 0
        %879 = vmatpush1.bf16.msra.mxu0 0
        %880 = vmatprep.subr.bf16.mxu0 0
        %881 = vmatpush1.bf16.msra.mxu0 0
        %882 = vmatprep.subr.bf16.mxu0 0
        %883 = vmatpush1.bf16.msra.mxu0 0
        %884 = vmatprep.subr.bf16.mxu0 0
        %885 = vmatpush1.bf16.msra.mxu0 0
        %886 = vmatprep.subr.bf16.mxu0 0
        %887 = vmatpush1.bf16.msra.mxu0 0
        %888 = vmatprep.subr.bf16.mxu0 0
        %889 = vmatpush1.bf16.msra.mxu0 0
        %890 = vmatprep.subr.bf16.mxu0 %v871
        %891 = vmatpush1.bf16.msra.mxu0 %v868
        %892 = vmatprep.subr.bf16.mxu0 0
        %893 = vmatpush2.bf16.msra.mxu0 0
        %894 = vmatprep.subr.bf16.mxu0 0
        %895 = vmatpush2.bf16.msra.mxu0 0
        %896 = vmatprep.subr.bf16.mxu0 0
        %897 = vmatpush2.bf16.msra.mxu0 0
        %898 = vmatprep.subr.bf16.mxu0 0
        %899 = vmatpush2.bf16.msra.mxu0 0
        %900 = vmatprep.subr.bf16.mxu0 0
        %901 = vmatpush2.bf16.msra.mxu0 0
        %902 = vmatprep.subr.bf16.mxu0 0
        %903 = vmatpush2.bf16.msra.mxu0 0
        %904 = vmatprep.subr.bf16.mxu0 0
        %905 = vmatpush2.bf16.msra.mxu0 0
        %906 = vmatprep.subr.bf16.mxu0 0
        %907 = vmatpush2.bf16.msra.mxu0 0
        %908 = vmatprep.mubr.bf16.mxu0 0
        %909 = vmatmul.mubr.bf16.gmra.mxu0 %v865
        %v910 = vpop.f32.mrf.mxu0
        %v911 = vadd.f32 0.0, %v910
        %v912 = vpop.f32.mrf.mxu0
        %v913 = vadd.f32 0.0, %v912
        %v914 = vpop.f32.mrf.mxu0
        %v915 = vpop.f32.mrf.mxu0
        %916 = vdwg.mxu0
        %917 = vmatprep.subr.bf16.mxu0 0
        %918 = vmatpush1.bf16.msra.mxu0 0
        %919 = vmatprep.subr.bf16.mxu0 0
        %920 = vmatpush1.bf16.msra.mxu0 0
        %921 = vmatprep.subr.bf16.mxu0 0
        %922 = vmatpush1.bf16.msra.mxu0 0
        %923 = vmatprep.subr.bf16.mxu0 0
        %924 = vmatpush1.bf16.msra.mxu0 0
        %925 = vmatprep.subr.bf16.mxu0 0
        %926 = vmatpush1.bf16.msra.mxu0 0
        %927 = vmatprep.subr.bf16.mxu0 0
        %928 = vmatpush1.bf16.msra.mxu0 0
        %929 = vmatprep.subr.bf16.mxu0 0
        %930 = vmatpush1.bf16.msra.mxu0 0
        %931 = vmatprep.subr.bf16.mxu0 0
        %932 = vmatpush1.bf16.msra.mxu0 %v874
        %933 = vmatprep.subr.bf16.mxu0 0
        %934 = vmatpush2.bf16.msra.mxu0 0
        %935 = vmatprep.subr.bf16.mxu0 0
        %936 = vmatpush2.bf16.msra.mxu0 0
        %937 = vmatprep.subr.bf16.mxu0 0
        %938 = vmatpush2.bf16.msra.mxu0 0
        %939 = vmatprep.subr.bf16.mxu0 0
        %940 = vmatpush2.bf16.msra.mxu0 0
        %941 = vmatprep.subr.bf16.mxu0 0
        %942 = vmatpush2.bf16.msra.mxu0 0
        %943 = vmatprep.subr.bf16.mxu0 0
        %944 = vmatpush2.bf16.msra.mxu0 0
        %945 = vmatprep.subr.bf16.mxu0 0
        %946 = vmatpush2.bf16.msra.mxu0 0
        %947 = vmatprep.subr.bf16.mxu0 0
        %948 = vmatpush2.bf16.msra.mxu0 0
        %949 = vmatprep.mubr.bf16.mxu0 0
        %950 = vmatmul.mubr.bf16.gmra.mxu0 %v865
        %v951 = vpop.f32.mrf.mxu0
        %v952 = vadd.f32 0.0, %v951
        %v953 = vpop.f32.mrf.mxu0
        %v954 = vpop.f32.mrf.mxu0
        %v955 = vpop.f32.mrf.mxu0
        %956 = vdwg.mxu0
        %v957 = vadd.f32 %v852, %v911
        %v958 = vadd.f32 %v853, %v913
        %v959 = vadd.f32 %v854, %v952
        %960 = vrot.lane.b32.xlu0 %v229, 91
        %v961 = vpop.permute.xlu0 %960
        %962 = vrot.lane.b32.xlu0 %v237, 91
        %v963 = vpop.permute.xlu0 %962
        %964 = vrot.lane.b32.xlu0 %v236, 91
        %v965 = vpop.permute.xlu0 %964
        %vm966 = vcmask 744448
        %v967 = vsel %vm966, %v961, %v963
        %v968 = vsel %vm966, %v963, %v965
        %v970 = vsel %vm247, %v219, 0
        %v973 = vsel %vm251, %v967, 0
        %v976 = vsel %vm251, %v968, 0
        %v979 = vsel %vm251, %v965, 0
        %981 = vmatprep.subr.bf16.mxu0 0
        %982 = vmatpush1.bf16.msra.mxu0 0
        %983 = vmatprep.subr.bf16.mxu0 0
        %984 = vmatpush1.bf16.msra.mxu0 0
        %985 = vmatprep.subr.bf16.mxu0 0
        %986 = vmatpush1.bf16.msra.mxu0 0
        %987 = vmatprep.subr.bf16.mxu0 0
        %988 = vmatpush1.bf16.msra.mxu0 0
        %989 = vmatprep.subr.bf16.mxu0 0
        %990 = vmatpush1.bf16.msra.mxu0 0
        %991 = vmatprep.subr.bf16.mxu0 0
        %992 = vmatpush1.bf16.msra.mxu0 0
        %993 = vmatprep.subr.bf16.mxu0 0
        %994 = vmatpush1.bf16.msra.mxu0 0
        %995 = vmatprep.subr.bf16.mxu0 %v976
        %996 = vmatpush1.bf16.msra.mxu0 %v973
        %997 = vmatprep.subr.bf16.mxu0 0
        %998 = vmatpush2.bf16.msra.mxu0 0
        %999 = vmatprep.subr.bf16.mxu0 0
        %1000 = vmatpush2.bf16.msra.mxu0 0
        %1001 = vmatprep.subr.bf16.mxu0 0
        %1002 = vmatpush2.bf16.msra.mxu0 0
        %1003 = vmatprep.subr.bf16.mxu0 0
        %1004 = vmatpush2.bf16.msra.mxu0 0
        %1005 = vmatprep.subr.bf16.mxu0 0
        %1006 = vmatpush2.bf16.msra.mxu0 0
        %1007 = vmatprep.subr.bf16.mxu0 0
        %1008 = vmatpush2.bf16.msra.mxu0 0
        %1009 = vmatprep.subr.bf16.mxu0 0
        %1010 = vmatpush2.bf16.msra.mxu0 0
        %1011 = vmatprep.subr.bf16.mxu0 0
        %1012 = vmatpush2.bf16.msra.mxu0 0
        %1013 = vmatprep.mubr.bf16.mxu0 0
        %1014 = vmatmul.mubr.bf16.gmra.mxu0 %v970
        %v1015 = vpop.f32.mrf.mxu0
        %v1016 = vadd.f32 0.0, %v1015
        %v1017 = vpop.f32.mrf.mxu0
        %v1018 = vadd.f32 0.0, %v1017
        %v1019 = vpop.f32.mrf.mxu0
        %v1020 = vpop.f32.mrf.mxu0
        %1021 = vdwg.mxu0
        %1022 = vmatprep.subr.bf16.mxu0 0
        %1023 = vmatpush1.bf16.msra.mxu0 0
        %1024 = vmatprep.subr.bf16.mxu0 0
        %1025 = vmatpush1.bf16.msra.mxu0 0
        %1026 = vmatprep.subr.bf16.mxu0 0
        %1027 = vmatpush1.bf16.msra.mxu0 0
        %1028 = vmatprep.subr.bf16.mxu0 0
        %1029 = vmatpush1.bf16.msra.mxu0 0
        %1030 = vmatprep.subr.bf16.mxu0 0
        %1031 = vmatpush1.bf16.msra.mxu0 0
        %1032 = vmatprep.subr.bf16.mxu0 0
        %1033 = vmatpush1.bf16.msra.mxu0 0
        %1034 = vmatprep.subr.bf16.mxu0 0
        %1035 = vmatpush1.bf16.msra.mxu0 0
        %1036 = vmatprep.subr.bf16.mxu0 0
        %1037 = vmatpush1.bf16.msra.mxu0 %v979
        %1038 = vmatprep.subr.bf16.mxu0 0
        %1039 = vmatpush2.bf16.msra.mxu0 0
        %1040 = vmatprep.subr.bf16.mxu0 0
        %1041 = vmatpush2.bf16.msra.mxu0 0
        %1042 = vmatprep.subr.bf16.mxu0 0
        %1043 = vmatpush2.bf16.msra.mxu0 0
        %1044 = vmatprep.subr.bf16.mxu0 0
        %1045 = vmatpush2.bf16.msra.mxu0 0
        %1046 = vmatprep.subr.bf16.mxu0 0
        %1047 = vmatpush2.bf16.msra.mxu0 0
        %1048 = vmatprep.subr.bf16.mxu0 0
        %1049 = vmatpush2.bf16.msra.mxu0 0
        %1050 = vmatprep.subr.bf16.mxu0 0
        %1051 = vmatpush2.bf16.msra.mxu0 0
        %1052 = vmatprep.subr.bf16.mxu0 0
        %1053 = vmatpush2.bf16.msra.mxu0 0
        %1054 = vmatprep.mubr.bf16.mxu0 0
        %1055 = vmatmul.mubr.bf16.gmra.mxu0 %v970
        %v1056 = vpop.f32.mrf.mxu0
        %v1057 = vadd.f32 0.0, %v1056
        %v1058 = vpop.f32.mrf.mxu0
        %v1059 = vpop.f32.mrf.mxu0
        %v1060 = vpop.f32.mrf.mxu0
        %1061 = vdwg.mxu0
        %v1062 = vadd.f32 %v957, %v1016
        %v1063 = vadd.f32 %v958, %v1018
        %v1064 = vadd.f32 %v959, %v1057
        %1065 = vrot.lane.b32.xlu0 %v229, 90
        %v1066 = vpop.permute.xlu0 %1065
        %1067 = vrot.lane.b32.xlu0 %v237, 90
        %v1068 = vpop.permute.xlu0 %1067
        %1069 = vrot.lane.b32.xlu0 %v236, 90
        %v1070 = vpop.permute.xlu0 %1069
        %vm1071 = vcmask 736256
        %v1072 = vsel %vm1071, %v1066, %v1068
        %v1073 = vsel %vm1071, %v1068, %v1070
        %v1075 = vsel %vm247, %v220, 0
        %v1078 = vsel %vm251, %v1072, 0
        %v1081 = vsel %vm251, %v1073, 0
        %v1084 = vsel %vm251, %v1070, 0
        %1086 = vmatprep.subr.bf16.mxu0 0
        %1087 = vmatpush1.bf16.msra.mxu0 0
        %1088 = vmatprep.subr.bf16.mxu0 0
        %1089 = vmatpush1.bf16.msra.mxu0 0
        %1090 = vmatprep.subr.bf16.mxu0 0
        %1091 = vmatpush1.bf16.msra.mxu0 0
        %1092 = vmatprep.subr.bf16.mxu0 0
        %1093 = vmatpush1.bf16.msra.mxu0 0
        %1094 = vmatprep.subr.bf16.mxu0 0
        %1095 = vmatpush1.bf16.msra.mxu0 0
        %1096 = vmatprep.subr.bf16.mxu0 0
        %1097 = vmatpush1.bf16.msra.mxu0 0
        %1098 = vmatprep.subr.bf16.mxu0 0
        %1099 = vmatpush1.bf16.msra.mxu0 0
        %1100 = vmatprep.subr.bf16.mxu0 %v1081
        %1101 = vmatpush1.bf16.msra.mxu0 %v1078
        %1102 = vmatprep.subr.bf16.mxu0 0
        %1103 = vmatpush2.bf16.msra.mxu0 0
        %1104 = vmatprep.subr.bf16.mxu0 0
        %1105 = vmatpush2.bf16.msra.mxu0 0
        %1106 = vmatprep.subr.bf16.mxu0 0
        %1107 = vmatpush2.bf16.msra.mxu0 0
        %1108 = vmatprep.subr.bf16.mxu0 0
        %1109 = vmatpush2.bf16.msra.mxu0 0
        %1110 = vmatprep.subr.bf16.mxu0 0
        %1111 = vmatpush2.bf16.msra.mxu0 0
        %1112 = vmatprep.subr.bf16.mxu0 0
        %1113 = vmatpush2.bf16.msra.mxu0 0
        %1114 = vmatprep.subr.bf16.mxu0 0
        %1115 = vmatpush2.bf16.msra.mxu0 0
        %1116 = vmatprep.subr.bf16.mxu0 0
        %1117 = vmatpush2.bf16.msra.mxu0 0
        %1118 = vmatprep.mubr.bf16.mxu0 0
        %1119 = vmatmul.mubr.bf16.gmra.mxu0 %v1075
        %v1120 = vpop.f32.mrf.mxu0
        %v1121 = vadd.f32 0.0, %v1120
        %v1122 = vpop.f32.mrf.mxu0
        %v1123 = vadd.f32 0.0, %v1122
        %v1124 = vpop.f32.mrf.mxu0
        %v1125 = vpop.f32.mrf.mxu0
        %1126 = vdwg.mxu0
        %1127 = vmatprep.subr.bf16.mxu0 0
        %1128 = vmatpush1.bf16.msra.mxu0 0
        %1129 = vmatprep.subr.bf16.mxu0 0
        %1130 = vmatpush1.bf16.msra.mxu0 0
        %1131 = vmatprep.subr.bf16.mxu0 0
        %1132 = vmatpush1.bf16.msra.mxu0 0
        %1133 = vmatprep.subr.bf16.mxu0 0
        %1134 = vmatpush1.bf16.msra.mxu0 0
        %1135 = vmatprep.subr.bf16.mxu0 0
        %1136 = vmatpush1.bf16.msra.mxu0 0
        %1137 = vmatprep.subr.bf16.mxu0 0
        %1138 = vmatpush1.bf16.msra.mxu0 0
        %1139 = vmatprep.subr.bf16.mxu0 0
        %1140 = vmatpush1.bf16.msra.mxu0 0
        %1141 = vmatprep.subr.bf16.mxu0 0
        %1142 = vmatpush1.bf16.msra.mxu0 %v1084
        %1143 = vmatprep.subr.bf16.mxu0 0
        %1144 = vmatpush2.bf16.msra.mxu0 0
        %1145 = vmatprep.subr.bf16.mxu0 0
        %1146 = vmatpush2.bf16.msra.mxu0 0
        %1147 = vmatprep.subr.bf16.mxu0 0
        %1148 = vmatpush2.bf16.msra.mxu0 0
        %1149 = vmatprep.subr.bf16.mxu0 0
        %1150 = vmatpush2.bf16.msra.mxu0 0
        %1151 = vmatprep.subr.bf16.mxu0 0
        %1152 = vmatpush2.bf16.msra.mxu0 0
        %1153 = vmatprep.subr.bf16.mxu0 0
        %1154 = vmatpush2.bf16.msra.mxu0 0
        %1155 = vmatprep.subr.bf16.mxu0 0
        %1156 = vmatpush2.bf16.msra.mxu0 0
        %1157 = vmatprep.subr.bf16.mxu0 0
        %1158 = vmatpush2.bf16.msra.mxu0 0
        %1159 = vmatprep.mubr.bf16.mxu0 0
        %1160 = vmatmul.mubr.bf16.gmra.mxu0 %v1075
        %v1161 = vpop.f32.mrf.mxu0
        %v1162 = vadd.f32 0.0, %v1161
        %v1163 = vpop.f32.mrf.mxu0
        %v1164 = vpop.f32.mrf.mxu0
        %v1165 = vpop.f32.mrf.mxu0
        %1166 = vdwg.mxu0
        %v1167 = vadd.f32 %v1062, %v1121
        %v1168 = vadd.f32 %v1063, %v1123
        %v1169 = vadd.f32 %v1064, %v1162
        %v1170 = vld [vmem:[#allocation2] sm:$0xff]
        %1172 = vset.pattern.permute.xlu0 0
        %1173 = vperm.xlu0 %1172, %v1170
        %v1174 = vpop.permute.xlu0 %1173
        %v1176 = vadd.f32 %v1167, %v1174
        %v1177 = vadd.f32 %v1168, %v1174
        %v1178 = vadd.f32 %v1169, %v1174
        %v1179 = vmax.f32 %v1176, 0.0
        %v1180 = vmax.f32 %v1177, 0.0
        %v1181 = vmax.f32 %v1178, 0.0
        %v1182 = vld [vmem:[%s3] sm:$0x7]
        %v1184 = vlaneseq
        %v1185 = vshrl.u32 %v1184, 7
        %v1186 = vsub.s32 0, %v1185
        %v1187 = vrot.slane %v1182, %v1186
        %v1188 = vlaneseq
        %v1189 = vshrl.u32 %v1188, 7
        %v1190 = vsub.s32 1, %v1189
        %v1191 = vrot.slane %v1182, %v1190
        %v1192 = vlaneseq
        %v1193 = vshrl.u32 %v1192, 7
        %v1194 = vsub.s32 2, %v1193
        %v1195 = vrot.slane %v1182, %v1194
        %v1199 = vmul.f32 %v1179, %v1187
        %v1200 = vmul.f32 %v1180, %v1191
        %v1201 = vmul.f32 %v1181, %v1195
        %v1202 = vadd.f32 %v1199, %v1200
        %vm1203 = vcmask 261120
        %v1204 = vsel %vm1203, %v1201, 0.0
        %v1205 = vadd.f32 %v1202, %v1204
        %1206 = vadd.xlane.f32.xlu0 %v1205
        %v1207 = vpop.xlane.xlu0 %1206
        %v1208 = vld [vmem:[#allocation2 + $0x8] sm:$0xff]
        %v1209 = vld [vmem:[#allocation2 + $0x10] sm:$0x1]
        %v1211 = vlaneseq
        %v1212 = vand.u32 %v1211, 127
        %v1213 = vlaneseq
        %v1214 = vshrl.u32 %v1213, 7
        %v1215 = vsub.s32 %v1212, %v1214
        %v1216 = vrot.slane %v1207, %v1215
        %vm1217 = vcmask 64512
        %v1218 = vsel %vm1217, %v1216, 0
        %1220 = vmatprep.subr.mxu0 0.0
        %1221 = vmatpush1.msra.mxu0 0.0
        %1222 = vmatprep.subr.mxu0 0.0
        %1223 = vmatpush1.msra.mxu0 0.0
        %1224 = vmatprep.subr.mxu0 0.0
        %1225 = vmatpush1.msra.mxu0 0.0
        %1226 = vmatprep.subr.mxu0 0.0
        %1227 = vmatpush1.msra.mxu0 0.0
        %1228 = vmatprep.subr.mxu0 0.0
        %1229 = vmatpush1.msra.mxu0 0.0
        %1230 = vmatprep.subr.mxu0 0.0
        %1231 = vmatpush1.msra.mxu0 0.0
        %1232 = vmatprep.subr.mxu0 0.0
        %1233 = vmatpush1.msra.mxu0 0.0
        %1234 = vmatprep.subr.mxu0 0.0
        %1235 = vmatpush1.msra.mxu0 0.0
        %1236 = vmatprep.subr.mxu0 0.0
        %1237 = vmatpush1.msra.mxu0 0.0
        %1238 = vmatprep.subr.mxu0 0.0
        %1239 = vmatpush1.msra.mxu0 0.0
        %1240 = vmatprep.subr.mxu0 0.0
        %1241 = vmatpush1.msra.mxu0 0.0
        %1242 = vmatprep.subr.mxu0 0.0
        %1243 = vmatpush1.msra.mxu0 0.0
        %1244 = vmatprep.subr.mxu0 0.0
        %1245 = vmatpush1.msra.mxu0 0.0
        %1246 = vmatprep.subr.mxu0 0.0
        %1247 = vmatpush1.msra.mxu0 0.0
        %1248 = vmatprep.subr.mxu0 0.0
        %1249 = vmatpush1.msra.mxu0 0.0
        %1250 = vmatprep.subr.mxu0 0.0
        %1251 = vmatpush1.msra.mxu0 %v1208
        %1252 = vmatprep.subr.mxu0 0.0
        %1253 = vmatpush2.msra.mxu0 0.0
        %1254 = vmatprep.subr.mxu0 0.0
        %1255 = vmatpush2.msra.mxu0 0.0
        %1256 = vmatprep.subr.mxu0 0.0
        %1257 = vmatpush2.msra.mxu0 0.0
        %1258 = vmatprep.subr.mxu0 0.0
        %1259 = vmatpush2.msra.mxu0 0.0
        %1260 = vmatprep.subr.mxu0 0.0
        %1261 = vmatpush2.msra.mxu0 0.0
        %1262 = vmatprep.subr.mxu0 0.0
        %1263 = vmatpush2.msra.mxu0 0.0
        %1264 = vmatprep.subr.mxu0 0.0
        %1265 = vmatpush2.msra.mxu0 0.0
        %1266 = vmatprep.subr.mxu0 0.0
        %1267 = vmatpush2.msra.mxu0 0.0
        %1268 = vmatprep.subr.mxu0 0.0
        %1269 = vmatpush2.msra.mxu0 0.0
        %1270 = vmatprep.subr.mxu0 0.0
        %1271 = vmatpush2.msra.mxu0 0.0
        %1272 = vmatprep.subr.mxu0 0.0
        %1273 = vmatpush2.msra.mxu0 0.0
        %1274 = vmatprep.subr.mxu0 0.0
        %1275 = vmatpush2.msra.mxu0 0.0
        %1276 = vmatprep.subr.mxu0 0.0
        %1277 = vmatpush2.msra.mxu0 0.0
        %1278 = vmatprep.subr.mxu0 0.0
        %1279 = vmatpush2.msra.mxu0 0.0
        %1280 = vmatprep.subr.mxu0 0.0
        %1281 = vmatpush2.msra.mxu0 0.0
        %1282 = vmatprep.subr.mxu0 0.0
        %1283 = vmatpush2.msra.mxu0 0.0
        %1284 = vmatprep.mubr.f32.mxu0 0.0
        %1285 = vmatmul.mubr.f32.gmra.mxu0 %v1218
        %v1286 = vpop.f32.mrf.mxu0
        %v1287 = vadd.f32 %v1209, %v1286
        %v1288 = vpop.f32.mrf.mxu0
        %1289 = vdwg.mxu0
        %v1290 = vmax.f32 %v1287, 0.0
        %v1291 = vld [vmem:[#allocation2 + $0x18] sm:$0xff]
        %v1292 = vld [vmem:[#allocation2 + $0x20] sm:$0xff]
        %v1293 = vld [vmem:[#allocation2 + $0x28] sm:$0xff]
        %v1294 = vld [vmem:[#allocation2 + $0x30] sm:$0xff]
        %v1295 = vld [vmem:[#allocation2 + $0x38] sm:$0x1]
        %v1297 = vsel %vm1203, %v1290, 0
        %1299 = vmatprep.subr.mxu0 0.0
        %1300 = vmatpush1.msra.mxu0 0.0
        %1301 = vmatprep.subr.mxu0 0.0
        %1302 = vmatpush1.msra.mxu0 0.0
        %1303 = vmatprep.subr.mxu0 0.0
        %1304 = vmatpush1.msra.mxu0 0.0
        %1305 = vmatprep.subr.mxu0 0.0
        %1306 = vmatpush1.msra.mxu0 0.0
        %1307 = vmatprep.subr.mxu0 0.0
        %1308 = vmatpush1.msra.mxu0 0.0
        %1309 = vmatprep.subr.mxu0 0.0
        %1310 = vmatpush1.msra.mxu0 0.0
        %1311 = vmatprep.subr.mxu0 0.0
        %1312 = vmatpush1.msra.mxu0 0.0
        %1313 = vmatprep.subr.mxu0 0.0
        %1314 = vmatpush1.msra.mxu0 0.0
        %1315 = vmatprep.subr.mxu0 0.0
        %1316 = vmatpush1.msra.mxu0 0.0
        %1317 = vmatprep.subr.mxu0 0.0
        %1318 = vmatpush1.msra.mxu0 0.0
        %1319 = vmatprep.subr.mxu0 0.0
        %1320 = vmatpush1.msra.mxu0 0.0
        %1321 = vmatprep.subr.mxu0 0.0
        %1322 = vmatpush1.msra.mxu0 0.0
        %1323 = vmatprep.subr.mxu0 0.0
        %1324 = vmatpush1.msra.mxu0 %v1294
        %1325 = vmatprep.subr.mxu0 0.0
        %1326 = vmatpush1.msra.mxu0 %v1293
        %1327 = vmatprep.subr.mxu0 0.0
        %1328 = vmatpush1.msra.mxu0 %v1292
        %1329 = vmatprep.subr.mxu0 0.0
        %1330 = vmatpush1.msra.mxu0 %v1291
        %1331 = vmatprep.subr.mxu0 0.0
        %1332 = vmatpush2.msra.mxu0 0.0
        %1333 = vmatprep.subr.mxu0 0.0
        %1334 = vmatpush2.msra.mxu0 0.0
        %1335 = vmatprep.subr.mxu0 0.0
        %1336 = vmatpush2.msra.mxu0 0.0
        %1337 = vmatprep.subr.mxu0 0.0
        %1338 = vmatpush2.msra.mxu0 0.0
        %1339 = vmatprep.subr.mxu0 0.0
        %1340 = vmatpush2.msra.mxu0 0.0
        %1341 = vmatprep.subr.mxu0 0.0
        %1342 = vmatpush2.msra.mxu0 0.0
        %1343 = vmatprep.subr.mxu0 0.0
        %1344 = vmatpush2.msra.mxu0 0.0
        %1345 = vmatprep.subr.mxu0 0.0
        %1346 = vmatpush2.msra.mxu0 0.0
        %1347 = vmatprep.subr.mxu0 0.0
        %1348 = vmatpush2.msra.mxu0 0.0
        %1349 = vmatprep.subr.mxu0 0.0
        %1350 = vmatpush2.msra.mxu0 0.0
        %1351 = vmatprep.subr.mxu0 0.0
        %1352 = vmatpush2.msra.mxu0 0.0
        %1353 = vmatprep.subr.mxu0 0.0
        %1354 = vmatpush2.msra.mxu0 0.0
        %1355 = vmatprep.subr.mxu0 0.0
        %1356 = vmatpush2.msra.mxu0 0.0
        %1357 = vmatprep.subr.mxu0 0.0
        %1358 = vmatpush2.msra.mxu0 0.0
        %1359 = vmatprep.subr.mxu0 0.0
        %1360 = vmatpush2.msra.mxu0 0.0
        %1361 = vmatprep.subr.mxu0 0.0
        %1362 = vmatpush2.msra.mxu0 0.0
        %1363 = vmatprep.mubr.f32.mxu0 0.0
        %1364 = vmatmul.mubr.f32.gmra.mxu0 %v1297
        %v1365 = vpop.f32.mrf.mxu0
        %v1366 = vadd.f32 %v1295, %v1365
        %v1367 = vpop.f32.mrf.mxu0
        %1368 = vdwg.mxu0
        %1369 = vst [vmem:[%s204] sm:$0x1] %v1366
        %s1370 = sand.u32 %s116, 1
        %s1371 = scalar_lea.sflag [#allocation4], %s1370
        %s1372 = sand.u32 %s116, 1
        %s1373 = scalar_lea.vmem [#allocation5], %s1372
        // Predicated region
        $region41: #{tpu_custom_call.1} parent=35 // pred_check
          %p1374 = pneg %p126
        $region42: #{tpu_custom_call.1} parent=35 // pred_check_branch
          %1376 = sbr.rel (%p1374) target = $region44
        $region43: #{tpu_custom_call.1} parent=35 // pred_region
          %s1378 = ssub.s32 16, 16
          %1379 = vsyncadd %s1371, %s1378
          %s1380 = smul.addr %s19, 16
          %s1381 = scalar_lea.hbm %s4, %s1380
          %s1383 = sshll.u32 %s1373, 4
          %s1384 = int_to_ptr.vmem [resolvable:$true] %s1383
          %1386 = dma.vmem_to_hbm [thread:$0]  %s1384, 16, %s1381, %s1371
        $region44: #{tpu_custom_call.1} parent=35 // pred_fallthru
          _
      $region36: #{tpu_custom_call.1} parent=5 // pred_fallthru
        _
      %p1387 = scmp.le.s32.totalorder 2, %s14
      // Predicated region
      $region45: #{tpu_custom_call.1} parent=5 // pred_check
        %p1388 = pneg %p1387
      $region46: #{tpu_custom_call.1} parent=5 // pred_check_branch
        %1390 = sbr.rel (%p1388) target = $region48
      $region47: #{tpu_custom_call.1} parent=5 // pred_region
        %s1391 = ssub.s32 %s14, 2
        // Predicated region
        $region49: #{tpu_custom_call.1} parent=47 // pred_check
          %p1392 = pneg %p132
        $region50: #{tpu_custom_call.1} parent=47 // pred_check_branch
          %1394 = sbr.rel (%p1392) target = $region52
        $region51: #{tpu_custom_call.1} parent=47 // pred_region
          %s1395 = sand.u32 %s117, 1
          %s1396 = scalar_lea.sflag [#allocation4], %s1395
          %s1397 = sand.u32 %s117, 1
          %s1398 = scalar_lea.vmem [#allocation5], %s1397
          %1399 = dma.done %s1396, 16
        $region52: #{tpu_custom_call.1} parent=47 // pred_fallthru
          _
      $region48: #{tpu_custom_call.1} parent=5 // pred_fallthru
        _
    $region6: #{tpu_custom_call.1} parent=1 // loop_footer
      %s18 = sadd.s32 1, %s14
    $region7: #{tpu_custom_call.1} parent=1 // loop_footer_branch
      %13 = sbr.rel target = $region3
    $region8: #{tpu_custom_call.1} parent=1 // loop_exit
      _
    %1400 = vsyncpa [#allocation3], 1
    %s1401 = scalar_lea.sflag [#allocation3], 1
    %1402 = vsyncpa %s1401, 1
    %1403 = vsyncpa [#allocation4], 1
    %s1404 = scalar_lea.sflag [#allocation4], 1
    %1405 = vsyncpa %s1404, 1

</llo_original>
